<compile_context>
chip_gen: v7x
topology: tpu7x:2x2x1
jax: 0.10.0
libtpu: 0.0.40
codegen_flags: <defaults>
</compile_context>

<pallas_src>
from functools import partial

import jax
import jax.numpy as jnp
from jax.experimental import pallas as pl
from jax.experimental.pallas import tpu as pltpu

HIDDEN = 128        # LSTM hidden size (fixed in the module)
MLP_HIDDEN = 64     # first Linear output size
BN_EPS = 1e-5
NEG_SLOPE = 0.1     # LeakyReLU slope
SUBLANE = 8         # f32 sublane tile


def _sigmoid(x):
    # sigmoid(x) == 0.5 * (tanh(0.5 x) + 1): one EUP push instead of exp + reciprocal.
    return 0.5 * jnp.tanh(0.5 * x) + 0.5


# ---------------------------------------------------------------------------
# Fused kernel: input projection + LSTM recurrence (in-kernel time loop) + MLP head.
#   x_ref    : (T, bblk, F)   time-major input block (batch padded to sublane multiple)
#   wih_ref  : (F, 4H)        input weights (transposed), f32
#   blstm_ref: (1, 4H)        b_ih + b_hh, f32
#   whh_ref  : (H, 4H)        recurrent weights (transposed), bf16
#   w1_ref   : (H, 64)        first Linear with eval-BN folded in, bf16
#   b1_ref   : (1, 64)        f32
#   w2_ref   : (1, 64)        second Linear (64 -> 1) as a row vector, f32
#   b2_ref   : (1, 1)         f32
#   out_ref  : (T, bblk, 1)   per-(t, b) scalar output
#   gx_sc    : (T, bblk, 4H)  VMEM scratch: precomputed input projection (+ bias)
#   h_all_sc : (T, bblk, H)   VMEM scratch: every timestep's hidden state
# ---------------------------------------------------------------------------
def _lstm_mlp_kernel(x_ref, wih_ref, blstm_ref, whh_ref, w1_ref, b1_ref,
                     w2_ref, b2_ref, out_ref, gx_sc, h_all_sc,
                     *, bblk: int, seq_len: int, feat: int):
    H = HIDDEN

    # ---- Prologue: fused input projection for ALL timesteps (one parallel MXU
    # matmul, off the serial critical path; gx never round-trips through HBM). ----
    x2d = x_ref[...].reshape(seq_len * bblk, feat)                     # free leading merge
    gx2d = (jnp.dot(x2d, wih_ref[...], preferred_element_type=jnp.float32)
            + blstm_ref[...])
    gx_sc[...] = gx2d.reshape(seq_len, bblk, 4 * H)                    # free leading split

    whh = whh_ref[...]                                                 # (H, 4H) bf16, loop-invariant
    # TODO(synk): push whh once with pltpu.matmul_push_rhs and use matmul_acc_lhs per
    # step so the 128x512 weight is not re-fed into the systolic array every timestep.

    def step(t, carry):
        h, c = carry
        # Only the recurrent matmul is on the serial path; bf16 operands, f32 accum.
        gates = gx_sc[t] + jnp.dot(h.astype(jnp.bfloat16), whh,
                                   preferred_element_type=jnp.float32)
        i = _sigmoid(gates[:, 0 * H:1 * H])                            # PyTorch order i,f,g,o
        f = _sigmoid(gates[:, 1 * H:2 * H])
        g = jnp.tanh(gates[:, 2 * H:3 * H])
        o = _sigmoid(gates[:, 3 * H:4 * H])
        c = f * c + i * g
        h = o * jnp.tanh(c)
        h_all_sc[t] = h                                                # aligned first-axis store
        return (h, c)

    unroll = (8 if seq_len % 8 == 0 else
              4 if seq_len % 4 == 0 else
              2 if seq_len % 2 == 0 else 1)
    zeros = jnp.zeros((bblk, H), jnp.float32)
    jax.lax.fori_loop(0, seq_len, step, (zeros, zeros), unroll=unroll)

    # ---- Fused MLP head over all T*bblk VMEM-resident hidden states ----
    # BatchNorm1d (eval) folded into w1/b1; Dropout(0.2) is identity in eval.
    h_flat = h_all_sc[...].reshape(seq_len * bblk, H).astype(jnp.bfloat16)
    z = (jnp.dot(h_flat, w1_ref[...], preferred_element_type=jnp.float32)
         + b1_ref[...])
    z = jnp.where(z >= 0, z, NEG_SLOPE * z)                            # LeakyReLU(0.1)
    z3 = z.reshape(seq_len, bblk, MLP_HIDDEN)                          # free leading split
    # 64 -> 1 Linear as VPU multiply + lane reduction (avoid a K=64, N=1 MXU matmul).
    y = jnp.sum(z3 * w2_ref[...], axis=-1, keepdims=True) + b2_ref[...]   # (T, bblk, 1)
    out_ref[...] = jnp.where(y >= 0, y, NEG_SLOPE * y)                 # LeakyReLU(0.1)


# ---------------------------------------------------------------------------
# Wrapper
# ---------------------------------------------------------------------------
def lstm_mlp_forward(x, params, *, batch_blocks: int = 1):
    """batch_blocks: set to 2 on v7x (when padded batch >= 16) to use both TensorCores;
    keep 1 on single-TC v5e/v6e (splitting only serializes the recurrence there)."""
    B, T, F = x.shape
    x = x.astype(jnp.float32)

    # Pad batch so each per-core block is a multiple of the f32 sublane tile (8):
    # all per-timestep loads/stores inside the kernel are then fully aligned.
    bblk = ((max(1, -(-B // batch_blocks)) + SUBLANE - 1) // SUBLANE) * SUBLANE
    B_pad = bblk * batch_blocks

    # Time-major, batch-padded input. Tiny layout plumbing: x is (T*B, F); the big
    # (T*B, 4H) gx tensor is produced inside the kernel and never written to HBM.
    xt = jnp.transpose(x, (1, 0, 2))
    xt = jnp.pad(xt, ((0, 0), (0, B_pad - B), (0, 0)))

    # Explicit VMEM budget sized to the real buffers (scratch + I/O blocks + weights
    # + post-loop temporaries), with 2x headroom, capped at the v7x 64 MiB ceiling.
    f32b, bf16b = 4, 2
    scratch_bytes = T * bblk * (4 * HIDDEN + HIDDEN) * f32b
    io_bytes = 2 * T * bblk * (F + 1) * f32b
    w_bytes = 2 * (F * 4 * HIDDEN * f32b + 4 * HIDDEN * f32b
                   + HIDDEN * 4 * HIDDEN * bf16b + HIDDEN * MLP_HIDDEN * bf16b
                   + (2 * MLP_HIDDEN + 1) * f32b)
    tmp_bytes = T * bblk * (4 * HIDDEN + HIDDEN + MLP_HIDDEN) * f32b
    vmem_limit = int(min(64 << 20,
                         max(4 << 20,
                             2 * (scratch_bytes + io_bytes + w_bytes + tmp_bytes))))

    def full_spec(shape):
        return pl.BlockSpec(shape, lambda b, _s=shape: (0,) * len(_s))

    kernel = partial(_lstm_mlp_kernel, bblk=bblk, seq_len=T, feat=F)
    y = pl.pallas_call(
        kernel,
        out_shape=jax.ShapeDtypeStruct((T, B_pad, 1), jnp.float32),
        grid=(batch_blocks,),
        in_specs=[
            pl.BlockSpec((T, bblk, F), lambda b: (0, b, 0)),        # x (time-major)
            full_spec((F, 4 * HIDDEN)),                             # W_ih^T
            full_spec((1, 4 * HIDDEN)),                             # b_ih + b_hh
            full_spec((HIDDEN, 4 * HIDDEN)),                        # W_hh^T (bf16)
            full_spec((HIDDEN, MLP_HIDDEN)),                        # W1^T, BN-folded (bf16)
            full_spec((1, MLP_HIDDEN)),                             # b1, BN-folded
            full_spec((1, MLP_HIDDEN)),                             # w2 row
            full_spec((1, 1)),                                      # b2
        ],
        out_specs=pl.BlockSpec((T, bblk, 1), lambda b: (0, b, 0)),
        scratch_shapes=[
            pltpu.VMEM((T, bblk, 4 * HIDDEN), jnp.float32),         # gx (VMEM-only)
            pltpu.VMEM((T, bblk, HIDDEN), jnp.float32),             # h history
        ],
        compiler_params=pltpu.CompilerParams(
            dimension_semantics=("parallel",),
            vmem_limit_bytes=vmem_limit),
    )(xt, params["wih_t"], params["b_lstm"], params["whh_t"],
      params["w1f_t"], params["b1f"], params["w2_row"], params["b2"])

    # (T, B_pad, 1) -> (B, T); drop padded batch rows (layout plumbing only).
    return y[:, :B, 0].T


# ---------------------------------------------------------------------------
# Deterministic parameter init (PyTorch-style uniform bounds, fresh BN stats),
# returned in kernel-ready form with eval-mode BN folded into the first Linear.
# ---------------------------------------------------------------------------
def init_params(key, features_n):
    ks = jax.random.split(key, 8)
    f32 = jnp.float32
    k_lstm = 1.0 / jnp.sqrt(HIDDEN)
    wih = jax.random.uniform(ks[0], (4 * HIDDEN, features_n), f32, -k_lstm, k_lstm)
    whh = jax.random.uniform(ks[1], (4 * HIDDEN, HIDDEN), f32, -k_lstm, k_lstm)
    b_ih = jax.random.uniform(ks[2], (4 * HIDDEN,), f32, -k_lstm, k_lstm)
    b_hh = jax.random.uniform(ks[3], (4 * HIDDEN,), f32, -k_lstm, k_lstm)
    k1 = 1.0 / jnp.sqrt(HIDDEN)
    w1 = jax.random.uniform(ks[4], (MLP_HIDDEN, HIDDEN), f32, -k1, k1)
    b1 = jax.random.uniform(ks[5], (MLP_HIDDEN,), f32, -k1, k1)
    k2 = 1.0 / jnp.sqrt(MLP_HIDDEN)
    w2 = jax.random.uniform(ks[6], (1, MLP_HIDDEN), f32, -k2, k2)
    b2 = jax.random.uniform(ks[7], (1,), f32, -k2, k2)

    # Fresh BatchNorm1d(64) eval-mode statistics / affine params.
    gamma = jnp.ones((MLP_HIDDEN,), f32)
    beta = jnp.zeros((MLP_HIDDEN,), f32)
    mean = jnp.zeros((MLP_HIDDEN,), f32)
    var = jnp.ones((MLP_HIDDEN,), f32)

    # Fold eval-mode BN into Linear(128, 64): numerically equivalent.
    scale = gamma * jax.lax.rsqrt(var + BN_EPS)                    # (64,)
    w1f_t = w1.T * scale[None, :]                                  # (H, 64)
    b1f = ((b1 - mean) * scale + beta).reshape(1, MLP_HIDDEN)

    return dict(
        wih_t=wih.T.astype(f32),                                   # (F, 4H)   f32
        b_lstm=(b_ih + b_hh).reshape(1, 4 * HIDDEN).astype(f32),   # (1, 4H)   f32
        whh_t=whh.T.astype(jnp.bfloat16),                          # (H, 4H)   bf16 (f32 accum)
        w1f_t=w1f_t.astype(jnp.bfloat16),                          # (H, 64)   bf16, BN-folded
        b1f=b1f.astype(f32),                                       # (1, 64)   BN-folded
        w2_row=w2.reshape(1, MLP_HIDDEN).astype(f32),              # (1, 64)
        b2=b2.reshape(1, 1).astype(f32),                           # (1, 1)
    )


if __name__ == "__main__":
    key = jax.random.PRNGKey(0)
    kx, kp = jax.random.split(key)
    B, T, F = 2, 8, 16                                             # batch, seq, features_n
    x = jax.random.normal(kx, (B, T, F), jnp.float32)
    params = init_params(kp, F)
    fwd = jax.jit(partial(lstm_mlp_forward, batch_blocks=1))
    y = fwd(x, params)
    jax.block_until_ready(y)
    assert y.shape == (B, T) and y.dtype == jnp.float32
    assert bool(jnp.all(jnp.isfinite(y)))
    print("KERNEL_OK")
</pallas_src>

<mosaic_0001>
module attributes {stable_mosaic.version = 11 : i64} {
  func.func @_lstm_mlp_kernel(%arg0: i32, %arg1: memref<8x8x16xf32, #tpu.memory_space<vmem>>, %arg2: memref<16x512xf32, #tpu.memory_space<vmem>>, %arg3: memref<1x512xf32, #tpu.memory_space<vmem>>, %arg4: memref<128x512xbf16, #tpu.memory_space<vmem>>, %arg5: memref<128x64xbf16, #tpu.memory_space<vmem>>, %arg6: memref<1x64xf32, #tpu.memory_space<vmem>>, %arg7: memref<1x64xf32, #tpu.memory_space<vmem>>, %arg8: memref<1x1xf32, #tpu.memory_space<vmem>>, %arg9: memref<8x8x1xf32, #tpu.memory_space<vmem>>, %arg10: memref<8x8x512xf32, #tpu.memory_space<vmem>>, %arg11: memref<8x8x128xf32, #tpu.memory_space<vmem>>) attributes {dimension_semantics = [#tpu.dimension_semantics<parallel>], iteration_bounds = array<i64: 1>, scalar_prefetch = 0 : i64, scratch_operands = 2 : i64, tpu.core_type = #tpu.core_type<tc>, window_params = [{transform_indices = @transform_0, window_bounds = array<i64: 8, 8, 16>}, {pipeline_mode = #tpu.pipeline_mode<synchronous>, transform_indices = @transform_1, window_bounds = array<i64: 16, 512>}, {pipeline_mode = #tpu.pipeline_mode<synchronous>, transform_indices = @transform_2, window_bounds = array<i64: 1, 512>}, {pipeline_mode = #tpu.pipeline_mode<synchronous>, transform_indices = @transform_3, window_bounds = array<i64: 128, 512>}, {pipeline_mode = #tpu.pipeline_mode<synchronous>, transform_indices = @transform_4, window_bounds = array<i64: 128, 64>}, {pipeline_mode = #tpu.pipeline_mode<synchronous>, transform_indices = @transform_5, window_bounds = array<i64: 1, 64>}, {pipeline_mode = #tpu.pipeline_mode<synchronous>, transform_indices = @transform_6, window_bounds = array<i64: 1, 64>}, {pipeline_mode = #tpu.pipeline_mode<synchronous>, transform_indices = @transform_7, window_bounds = array<i64: 1, 1>}, {transform_indices = @transform_8, window_bounds = array<i64: 8, 8, 1>}]} {
    %c0 = arith.constant 0 : index
    %c0_0 = arith.constant 0 : index
    %c0_1 = arith.constant 0 : index
    %0 = vector.load %arg1[%c0, %c0_0, %c0_1] : memref<8x8x16xf32, #tpu.memory_space<vmem>>, vector<8x8x16xf32>
    %1 = vector.shape_cast %0 : vector<8x8x16xf32> to vector<64x16xf32>
    %c0_2 = arith.constant 0 : index
    %c0_3 = arith.constant 0 : index
    %2 = vector.load %arg2[%c0_2, %c0_3] : memref<16x512xf32, #tpu.memory_space<vmem>>, vector<16x512xf32>
    %cst = arith.constant dense<0.000000e+00> : vector<64x512xf32>
    %3 = tpu.matmul %1, %2, %cst {dimension_numbers = #tpu.dot_dimension_numbers<[1], [0], [0], [1], [0, 0, 1, 1], [], []>} : vector<64x16xf32>, vector<16x512xf32>, vector<64x512xf32> -> vector<64x512xf32>
    %c0_4 = arith.constant 0 : index
    %c0_5 = arith.constant 0 : index
    %4 = vector.load %arg3[%c0_4, %c0_5] : memref<1x512xf32, #tpu.memory_space<vmem>>, vector<1x512xf32>
    %5 = vector.broadcast %4 : vector<1x512xf32> to vector<64x512xf32>
    %6 = arith.addf %3, %5 : vector<64x512xf32>
    %7 = vector.shape_cast %6 : vector<64x512xf32> to vector<8x8x512xf32>
    %c0_6 = arith.constant 0 : index
    %c0_7 = arith.constant 0 : index
    %c0_8 = arith.constant 0 : index
    %8 = vector.load %arg10[%c0_6, %c0_7, %c0_8] : memref<8x8x512xf32, #tpu.memory_space<vmem>>, vector<8x8x512xf32>
    tpu.vector_store %arg10[%c0_6, %c0_7, %c0_8], %7 {strides = array<i32>} : memref<8x8x512xf32, #tpu.memory_space<vmem>>, vector<8x8x512xf32>,
    %c0_9 = arith.constant 0 : index
    %c0_10 = arith.constant 0 : index
    %9 = vector.load %arg4[%c0_9, %c0_10] : memref<128x512xbf16, #tpu.memory_space<vmem>>, vector<128x512xbf16>
    %cst_11 = arith.constant 0.000000e+00 : f32
    %10 = vector.broadcast %cst_11 : f32 to vector<8x128xf32>
    %c0_i32 = arith.constant 0 : i32
    %11 = arith.index_cast %c0_i32 : i32 to index
    %c0_12 = arith.constant 0 : index
    %c0_13 = arith.constant 0 : index
    %12 = vector.load %arg10[%11, %c0_12, %c0_13] : memref<8x8x512xf32, #tpu.memory_space<vmem>>, vector<1x8x512xf32>
    %13 = vector.shape_cast %12 : vector<1x8x512xf32> to vector<8x512xf32>
    %14 = arith.truncf %10 : vector<8x128xf32> to vector<8x128xbf16>
    %cst_14 = arith.constant dense<0.000000e+00> : vector<8x512xf32>
    %15 = tpu.matmul %14, %9, %cst_14 {dimension_numbers = #tpu.dot_dimension_numbers<[1], [0], [0], [1], [0, 0, 1, 1], [], []>} : vector<8x128xbf16>, vector<128x512xbf16>, vector<8x512xf32> -> vector<8x512xf32>
    %16 = arith.addf %13, %15 : vector<8x512xf32>
    %17 = vector.extract_strided_slice %16 {offsets = [0, 0], sizes = [8, 128], strides = [1, 1]} : vector<8x512xf32> to vector<8x128xf32>
    %cst_15 = arith.constant 5.000000e-01 : f32
    %18 = vector.broadcast %cst_15 : f32 to vector<8x128xf32>
    %19 = arith.mulf %18, %17 : vector<8x128xf32>
    %20 = math.tanh %19 : vector<8x128xf32>
    %cst_16 = arith.constant 5.000000e-01 : f32
    %21 = vector.broadcast %cst_16 : f32 to vector<8x128xf32>
    %22 = arith.mulf %21, %20 : vector<8x128xf32>
    %cst_17 = arith.constant 5.000000e-01 : f32
    %23 = vector.broadcast %cst_17 : f32 to vector<8x128xf32>
    %24 = arith.addf %22, %23 : vector<8x128xf32>
    %25 = vector.extract_strided_slice %16 {offsets = [0, 128], sizes = [8, 128], strides = [1, 1]} : vector<8x512xf32> to vector<8x128xf32>
    %cst_18 = arith.constant 5.000000e-01 : f32
    %26 = vector.broadcast %cst_18 : f32 to vector<8x128xf32>
    %27 = arith.mulf %26, %25 : vector<8x128xf32>
    %28 = math.tanh %27 : vector<8x128xf32>
    %cst_19 = arith.constant 5.000000e-01 : f32
    %29 = vector.broadcast %cst_19 : f32 to vector<8x128xf32>
    %30 = arith.mulf %29, %28 : vector<8x128xf32>
    %cst_20 = arith.constant 5.000000e-01 : f32
    %31 = vector.broadcast %cst_20 : f32 to vector<8x128xf32>
    %32 = arith.addf %30, %31 : vector<8x128xf32>
    %33 = vector.extract_strided_slice %16 {offsets = [0, 256], sizes = [8, 128], strides = [1, 1]} : vector<8x512xf32> to vector<8x128xf32>
    %34 = math.tanh %33 : vector<8x128xf32>
    %35 = vector.extract_strided_slice %16 {offsets = [0, 384], sizes = [8, 128], strides = [1, 1]} : vector<8x512xf32> to vector<8x128xf32>
    %cst_21 = arith.constant 5.000000e-01 : f32
    %36 = vector.broadcast %cst_21 : f32 to vector<8x128xf32>
    %37 = arith.mulf %36, %35 : vector<8x128xf32>
    %38 = math.tanh %37 : vector<8x128xf32>
    %cst_22 = arith.constant 5.000000e-01 : f32
    %39 = vector.broadcast %cst_22 : f32 to vector<8x128xf32>
    %40 = arith.mulf %39, %38 : vector<8x128xf32>
    %cst_23 = arith.constant 5.000000e-01 : f32
    %41 = vector.broadcast %cst_23 : f32 to vector<8x128xf32>
    %42 = arith.addf %40, %41 : vector<8x128xf32>
    %43 = arith.mulf %32, %10 : vector<8x128xf32>
    %44 = arith.mulf %24, %34 : vector<8x128xf32>
    %45 = arith.addf %43, %44 : vector<8x128xf32>
    %46 = math.tanh %45 : vector<8x128xf32>
    %47 = arith.mulf %42, %46 : vector<8x128xf32>
    %48 = arith.index_cast %c0_i32 : i32 to index
    %c0_24 = arith.constant 0 : index
    %c0_25 = arith.constant 0 : index
    %49 = vector.load %arg11[%48, %c0_24, %c0_25] : memref<8x8x128xf32, #tpu.memory_space<vmem>>, vector<1x8x128xf32>
    %50 = vector.shape_cast %49 : vector<1x8x128xf32> to vector<8x128xf32>
    %51 = vector.shape_cast %47 : vector<8x128xf32> to vector<1x8x128xf32>
    tpu.vector_store %arg11[%48, %c0_24, %c0_25], %51 {strides = array<i32>} : memref<8x8x128xf32, #tpu.memory_space<vmem>>, vector<1x8x128xf32>,
    %c1_i32 = arith.constant 1 : i32
    %52 = arith.index_cast %c1_i32 : i32 to index
    %c0_26 = arith.constant 0 : index
    %c0_27 = arith.constant 0 : index
    %53 = vector.load %arg10[%52, %c0_26, %c0_27] : memref<8x8x512xf32, #tpu.memory_space<vmem>>, vector<1x8x512xf32>
    %54 = vector.shape_cast %53 : vector<1x8x512xf32> to vector<8x512xf32>
    %55 = arith.truncf %47 : vector<8x128xf32> to vector<8x128xbf16>
    %cst_28 = arith.constant dense<0.000000e+00> : vector<8x512xf32>
    %56 = tpu.matmul %55, %9, %cst_28 {dimension_numbers = #tpu.dot_dimension_numbers<[1], [0], [0], [1], [0, 0, 1, 1], [], []>} : vector<8x128xbf16>, vector<128x512xbf16>, vector<8x512xf32> -> vector<8x512xf32>
    %57 = arith.addf %54, %56 : vector<8x512xf32>
    %58 = vector.extract_strided_slice %57 {offsets = [0, 0], sizes = [8, 128], strides = [1, 1]} : vector<8x512xf32> to vector<8x128xf32>
    %cst_29 = arith.constant 5.000000e-01 : f32
    %59 = vector.broadcast %cst_29 : f32 to vector<8x128xf32>
    %60 = arith.mulf %59, %58 : vector<8x128xf32>
    %61 = math.tanh %60 : vector<8x128xf32>
    %cst_30 = arith.constant 5.000000e-01 : f32
    %62 = vector.broadcast %cst_30 : f32 to vector<8x128xf32>
    %63 = arith.mulf %62, %61 : vector<8x128xf32>
    %cst_31 = arith.constant 5.000000e-01 : f32
    %64 = vector.broadcast %cst_31 : f32 to vector<8x128xf32>
    %65 = arith.addf %63, %64 : vector<8x128xf32>
    %66 = vector.extract_strided_slice %57 {offsets = [0, 128], sizes = [8, 128], strides = [1, 1]} : vector<8x512xf32> to vector<8x128xf32>
    %cst_32 = arith.constant 5.000000e-01 : f32
    %67 = vector.broadcast %cst_32 : f32 to vector<8x128xf32>
    %68 = arith.mulf %67, %66 : vector<8x128xf32>
    %69 = math.tanh %68 : vector<8x128xf32>
    %cst_33 = arith.constant 5.000000e-01 : f32
    %70 = vector.broadcast %cst_33 : f32 to vector<8x128xf32>
    %71 = arith.mulf %70, %69 : vector<8x128xf32>
    %cst_34 = arith.constant 5.000000e-01 : f32
    %72 = vector.broadcast %cst_34 : f32 to vector<8x128xf32>
    %73 = arith.addf %71, %72 : vector<8x128xf32>
    %74 = vector.extract_strided_slice %57 {offsets = [0, 256], sizes = [8, 128], strides = [1, 1]} : vector<8x512xf32> to vector<8x128xf32>
    %75 = math.tanh %74 : vector<8x128xf32>
    %76 = vector.extract_strided_slice %57 {offsets = [0, 384], sizes = [8, 128], strides = [1, 1]} : vector<8x512xf32> to vector<8x128xf32>
    %cst_35 = arith.constant 5.000000e-01 : f32
    %77 = vector.broadcast %cst_35 : f32 to vector<8x128xf32>
    %78 = arith.mulf %77, %76 : vector<8x128xf32>
    %79 = math.tanh %78 : vector<8x128xf32>
    %cst_36 = arith.constant 5.000000e-01 : f32
    %80 = vector.broadcast %cst_36 : f32 to vector<8x128xf32>
    %81 = arith.mulf %80, %79 : vector<8x128xf32>
    %cst_37 = arith.constant 5.000000e-01 : f32
    %82 = vector.broadcast %cst_37 : f32 to vector<8x128xf32>
    %83 = arith.addf %81, %82 : vector<8x128xf32>
    %84 = arith.mulf %73, %45 : vector<8x128xf32>
    %85 = arith.mulf %65, %75 : vector<8x128xf32>
    %86 = arith.addf %84, %85 : vector<8x128xf32>
    %87 = math.tanh %86 : vector<8x128xf32>
    %88 = arith.mulf %83, %87 : vector<8x128xf32>
    %89 = arith.index_cast %c1_i32 : i32 to index
    %c0_38 = arith.constant 0 : index
    %c0_39 = arith.constant 0 : index
    %90 = vector.load %arg11[%89, %c0_38, %c0_39] : memref<8x8x128xf32, #tpu.memory_space<vmem>>, vector<1x8x128xf32>
    %91 = vector.shape_cast %90 : vector<1x8x128xf32> to vector<8x128xf32>
    %92 = vector.shape_cast %88 : vector<8x128xf32> to vector<1x8x128xf32>
    tpu.vector_store %arg11[%89, %c0_38, %c0_39], %92 {strides = array<i32>} : memref<8x8x128xf32, #tpu.memory_space<vmem>>, vector<1x8x128xf32>,
    %c2_i32 = arith.constant 2 : i32
    %93 = arith.index_cast %c2_i32 : i32 to index
    %c0_40 = arith.constant 0 : index
    %c0_41 = arith.constant 0 : index
    %94 = vector.load %arg10[%93, %c0_40, %c0_41] : memref<8x8x512xf32, #tpu.memory_space<vmem>>, vector<1x8x512xf32>
    %95 = vector.shape_cast %94 : vector<1x8x512xf32> to vector<8x512xf32>
    %96 = arith.truncf %88 : vector<8x128xf32> to vector<8x128xbf16>
    %cst_42 = arith.constant dense<0.000000e+00> : vector<8x512xf32>
    %97 = tpu.matmul %96, %9, %cst_42 {dimension_numbers = #tpu.dot_dimension_numbers<[1], [0], [0], [1], [0, 0, 1, 1], [], []>} : vector<8x128xbf16>, vector<128x512xbf16>, vector<8x512xf32> -> vector<8x512xf32>
    %98 = arith.addf %95, %97 : vector<8x512xf32>
    %99 = vector.extract_strided_slice %98 {offsets = [0, 0], sizes = [8, 128], strides = [1, 1]} : vector<8x512xf32> to vector<8x128xf32>
    %cst_43 = arith.constant 5.000000e-01 : f32
    %100 = vector.broadcast %cst_43 : f32 to vector<8x128xf32>
    %101 = arith.mulf %100, %99 : vector<8x128xf32>
    %102 = math.tanh %101 : vector<8x128xf32>
    %cst_44 = arith.constant 5.000000e-01 : f32
    %103 = vector.broadcast %cst_44 : f32 to vector<8x128xf32>
    %104 = arith.mulf %103, %102 : vector<8x128xf32>
    %cst_45 = arith.constant 5.000000e-01 : f32
    %105 = vector.broadcast %cst_45 : f32 to vector<8x128xf32>
    %106 = arith.addf %104, %105 : vector<8x128xf32>
    %107 = vector.extract_strided_slice %98 {offsets = [0, 128], sizes = [8, 128], strides = [1, 1]} : vector<8x512xf32> to vector<8x128xf32>
    %cst_46 = arith.constant 5.000000e-01 : f32
    %108 = vector.broadcast %cst_46 : f32 to vector<8x128xf32>
    %109 = arith.mulf %108, %107 : vector<8x128xf32>
    %110 = math.tanh %109 : vector<8x128xf32>
    %cst_47 = arith.constant 5.000000e-01 : f32
    %111 = vector.broadcast %cst_47 : f32 to vector<8x128xf32>
    %112 = arith.mulf %111, %110 : vector<8x128xf32>
    %cst_48 = arith.constant 5.000000e-01 : f32
    %113 = vector.broadcast %cst_48 : f32 to vector<8x128xf32>
    %114 = arith.addf %112, %113 : vector<8x128xf32>
    %115 = vector.extract_strided_slice %98 {offsets = [0, 256], sizes = [8, 128], strides = [1, 1]} : vector<8x512xf32> to vector<8x128xf32>
    %116 = math.tanh %115 : vector<8x128xf32>
    %117 = vector.extract_strided_slice %98 {offsets = [0, 384], sizes = [8, 128], strides = [1, 1]} : vector<8x512xf32> to vector<8x128xf32>
    %cst_49 = arith.constant 5.000000e-01 : f32
    %118 = vector.broadcast %cst_49 : f32 to vector<8x128xf32>
    %119 = arith.mulf %118, %117 : vector<8x128xf32>
    %120 = math.tanh %119 : vector<8x128xf32>
    %cst_50 = arith.constant 5.000000e-01 : f32
    %121 = vector.broadcast %cst_50 : f32 to vector<8x128xf32>
    %122 = arith.mulf %121, %120 : vector<8x128xf32>
    %cst_51 = arith.constant 5.000000e-01 : f32
    %123 = vector.broadcast %cst_51 : f32 to vector<8x128xf32>
    %124 = arith.addf %122, %123 : vector<8x128xf32>
    %125 = arith.mulf %114, %86 : vector<8x128xf32>
    %126 = arith.mulf %106, %116 : vector<8x128xf32>
    %127 = arith.addf %125, %126 : vector<8x128xf32>
    %128 = math.tanh %127 : vector<8x128xf32>
    %129 = arith.mulf %124, %128 : vector<8x128xf32>
    %130 = arith.index_cast %c2_i32 : i32 to index
    %c0_52 = arith.constant 0 : index
    %c0_53 = arith.constant 0 : index
    %131 = vector.load %arg11[%130, %c0_52, %c0_53] : memref<8x8x128xf32, #tpu.memory_space<vmem>>, vector<1x8x128xf32>
    %132 = vector.shape_cast %131 : vector<1x8x128xf32> to vector<8x128xf32>
    %133 = vector.shape_cast %129 : vector<8x128xf32> to vector<1x8x128xf32>
    tpu.vector_store %arg11[%130, %c0_52, %c0_53], %133 {strides = array<i32>} : memref<8x8x128xf32, #tpu.memory_space<vmem>>, vector<1x8x128xf32>,
    %c3_i32 = arith.constant 3 : i32
    %134 = arith.index_cast %c3_i32 : i32 to index
    %c0_54 = arith.constant 0 : index
    %c0_55 = arith.constant 0 : index
    %135 = vector.load %arg10[%134, %c0_54, %c0_55] : memref<8x8x512xf32, #tpu.memory_space<vmem>>, vector<1x8x512xf32>
    %136 = vector.shape_cast %135 : vector<1x8x512xf32> to vector<8x512xf32>
    %137 = arith.truncf %129 : vector<8x128xf32> to vector<8x128xbf16>
    %cst_56 = arith.constant dense<0.000000e+00> : vector<8x512xf32>
    %138 = tpu.matmul %137, %9, %cst_56 {dimension_numbers = #tpu.dot_dimension_numbers<[1], [0], [0], [1], [0, 0, 1, 1], [], []>} : vector<8x128xbf16>, vector<128x512xbf16>, vector<8x512xf32> -> vector<8x512xf32>
    %139 = arith.addf %136, %138 : vector<8x512xf32>
    %140 = vector.extract_strided_slice %139 {offsets = [0, 0], sizes = [8, 128], strides = [1, 1]} : vector<8x512xf32> to vector<8x128xf32>
    %cst_57 = arith.constant 5.000000e-01 : f32
    %141 = vector.broadcast %cst_57 : f32 to vector<8x128xf32>
    %142 = arith.mulf %141, %140 : vector<8x128xf32>
    %143 = math.tanh %142 : vector<8x128xf32>
    %cst_58 = arith.constant 5.000000e-01 : f32
    %144 = vector.broadcast %cst_58 : f32 to vector<8x128xf32>
    %145 = arith.mulf %144, %143 : vector<8x128xf32>
    %cst_59 = arith.constant 5.000000e-01 : f32
    %146 = vector.broadcast %cst_59 : f32 to vector<8x128xf32>
    %147 = arith.addf %145, %146 : vector<8x128xf32>
    %148 = vector.extract_strided_slice %139 {offsets = [0, 128], sizes = [8, 128], strides = [1, 1]} : vector<8x512xf32> to vector<8x128xf32>
    %cst_60 = arith.constant 5.000000e-01 : f32
    %149 = vector.broadcast %cst_60 : f32 to vector<8x128xf32>
    %150 = arith.mulf %149, %148 : vector<8x128xf32>
    %151 = math.tanh %150 : vector<8x128xf32>
    %cst_61 = arith.constant 5.000000e-01 : f32
    %152 = vector.broadcast %cst_61 : f32 to vector<8x128xf32>
    %153 = arith.mulf %152, %151 : vector<8x128xf32>
    %cst_62 = arith.constant 5.000000e-01 : f32
    %154 = vector.broadcast %cst_62 : f32 to vector<8x128xf32>
    %155 = arith.addf %153, %154 : vector<8x128xf32>
    %156 = vector.extract_strided_slice %139 {offsets = [0, 256], sizes = [8, 128], strides = [1, 1]} : vector<8x512xf32> to vector<8x128xf32>
    %157 = math.tanh %156 : vector<8x128xf32>
    %158 = vector.extract_strided_slice %139 {offsets = [0, 384], sizes = [8, 128], strides = [1, 1]} : vector<8x512xf32> to vector<8x128xf32>
    %cst_63 = arith.constant 5.000000e-01 : f32
    %159 = vector.broadcast %cst_63 : f32 to vector<8x128xf32>
    %160 = arith.mulf %159, %158 : vector<8x128xf32>
    %161 = math.tanh %160 : vector<8x128xf32>
    %cst_64 = arith.constant 5.000000e-01 : f32
    %162 = vector.broadcast %cst_64 : f32 to vector<8x128xf32>
    %163 = arith.mulf %162, %161 : vector<8x128xf32>
    %cst_65 = arith.constant 5.000000e-01 : f32
    %164 = vector.broadcast %cst_65 : f32 to vector<8x128xf32>
    %165 = arith.addf %163, %164 : vector<8x128xf32>
    %166 = arith.mulf %155, %127 : vector<8x128xf32>
    %167 = arith.mulf %147, %157 : vector<8x128xf32>
    %168 = arith.addf %166, %167 : vector<8x128xf32>
    %169 = math.tanh %168 : vector<8x128xf32>
    %170 = arith.mulf %165, %169 : vector<8x128xf32>
    %171 = arith.index_cast %c3_i32 : i32 to index
    %c0_66 = arith.constant 0 : index
    %c0_67 = arith.constant 0 : index
    %172 = vector.load %arg11[%171, %c0_66, %c0_67] : memref<8x8x128xf32, #tpu.memory_space<vmem>>, vector<1x8x128xf32>
    %173 = vector.shape_cast %172 : vector<1x8x128xf32> to vector<8x128xf32>
    %174 = vector.shape_cast %170 : vector<8x128xf32> to vector<1x8x128xf32>
    tpu.vector_store %arg11[%171, %c0_66, %c0_67], %174 {strides = array<i32>} : memref<8x8x128xf32, #tpu.memory_space<vmem>>, vector<1x8x128xf32>,
    %c4_i32 = arith.constant 4 : i32
    %175 = arith.index_cast %c4_i32 : i32 to index
    %c0_68 = arith.constant 0 : index
    %c0_69 = arith.constant 0 : index
    %176 = vector.load %arg10[%175, %c0_68, %c0_69] : memref<8x8x512xf32, #tpu.memory_space<vmem>>, vector<1x8x512xf32>
    %177 = vector.shape_cast %176 : vector<1x8x512xf32> to vector<8x512xf32>
    %178 = arith.truncf %170 : vector<8x128xf32> to vector<8x128xbf16>
    %cst_70 = arith.constant dense<0.000000e+00> : vector<8x512xf32>
    %179 = tpu.matmul %178, %9, %cst_70 {dimension_numbers = #tpu.dot_dimension_numbers<[1], [0], [0], [1], [0, 0, 1, 1], [], []>} : vector<8x128xbf16>, vector<128x512xbf16>, vector<8x512xf32> -> vector<8x512xf32>
    %180 = arith.addf %177, %179 : vector<8x512xf32>
    %181 = vector.extract_strided_slice %180 {offsets = [0, 0], sizes = [8, 128], strides = [1, 1]} : vector<8x512xf32> to vector<8x128xf32>
    %cst_71 = arith.constant 5.000000e-01 : f32
    %182 = vector.broadcast %cst_71 : f32 to vector<8x128xf32>
    %183 = arith.mulf %182, %181 : vector<8x128xf32>
    %184 = math.tanh %183 : vector<8x128xf32>
    %cst_72 = arith.constant 5.000000e-01 : f32
    %185 = vector.broadcast %cst_72 : f32 to vector<8x128xf32>
    %186 = arith.mulf %185, %184 : vector<8x128xf32>
    %cst_73 = arith.constant 5.000000e-01 : f32
    %187 = vector.broadcast %cst_73 : f32 to vector<8x128xf32>
    %188 = arith.addf %186, %187 : vector<8x128xf32>
    %189 = vector.extract_strided_slice %180 {offsets = [0, 128], sizes = [8, 128], strides = [1, 1]} : vector<8x512xf32> to vector<8x128xf32>
    %cst_74 = arith.constant 5.000000e-01 : f32
    %190 = vector.broadcast %cst_74 : f32 to vector<8x128xf32>
    %191 = arith.mulf %190, %189 : vector<8x128xf32>
    %192 = math.tanh %191 : vector<8x128xf32>
    %cst_75 = arith.constant 5.000000e-01 : f32
    %193 = vector.broadcast %cst_75 : f32 to vector<8x128xf32>
    %194 = arith.mulf %193, %192 : vector<8x128xf32>
    %cst_76 = arith.constant 5.000000e-01 : f32
    %195 = vector.broadcast %cst_76 : f32 to vector<8x128xf32>
    %196 = arith.addf %194, %195 : vector<8x128xf32>
    %197 = vector.extract_strided_slice %180 {offsets = [0, 256], sizes = [8, 128], strides = [1, 1]} : vector<8x512xf32> to vector<8x128xf32>
    %198 = math.tanh %197 : vector<8x128xf32>
    %199 = vector.extract_strided_slice %180 {offsets = [0, 384], sizes = [8, 128], strides = [1, 1]} : vector<8x512xf32> to vector<8x128xf32>
    %cst_77 = arith.constant 5.000000e-01 : f32
    %200 = vector.broadcast %cst_77 : f32 to vector<8x128xf32>
    %201 = arith.mulf %200, %199 : vector<8x128xf32>
    %202 = math.tanh %201 : vector<8x128xf32>
    %cst_78 = arith.constant 5.000000e-01 : f32
    %203 = vector.broadcast %cst_78 : f32 to vector<8x128xf32>
    %204 = arith.mulf %203, %202 : vector<8x128xf32>
    %cst_79 = arith.constant 5.000000e-01 : f32
    %205 = vector.broadcast %cst_79 : f32 to vector<8x128xf32>
    %206 = arith.addf %204, %205 : vector<8x128xf32>
    %207 = arith.mulf %196, %168 : vector<8x128xf32>
    %208 = arith.mulf %188, %198 : vector<8x128xf32>
    %209 = arith.addf %207, %208 : vector<8x128xf32>
    %210 = math.tanh %209 : vector<8x128xf32>
    %211 = arith.mulf %206, %210 : vector<8x128xf32>
    %212 = arith.index_cast %c4_i32 : i32 to index
    %c0_80 = arith.constant 0 : index
    %c0_81 = arith.constant 0 : index
    %213 = vector.load %arg11[%212, %c0_80, %c0_81] : memref<8x8x128xf32, #tpu.memory_space<vmem>>, vector<1x8x128xf32>
    %214 = vector.shape_cast %213 : vector<1x8x128xf32> to vector<8x128xf32>
    %215 = vector.shape_cast %211 : vector<8x128xf32> to vector<1x8x128xf32>
    tpu.vector_store %arg11[%212, %c0_80, %c0_81], %215 {strides = array<i32>} : memref<8x8x128xf32, #tpu.memory_space<vmem>>, vector<1x8x128xf32>,
    %c5_i32 = arith.constant 5 : i32
    %216 = arith.index_cast %c5_i32 : i32 to index
    %c0_82 = arith.constant 0 : index
    %c0_83 = arith.constant 0 : index
    %217 = vector.load %arg10[%216, %c0_82, %c0_83] : memref<8x8x512xf32, #tpu.memory_space<vmem>>, vector<1x8x512xf32>
    %218 = vector.shape_cast %217 : vector<1x8x512xf32> to vector<8x512xf32>
    %219 = arith.truncf %211 : vector<8x128xf32> to vector<8x128xbf16>
    %cst_84 = arith.constant dense<0.000000e+00> : vector<8x512xf32>
    %220 = tpu.matmul %219, %9, %cst_84 {dimension_numbers = #tpu.dot_dimension_numbers<[1], [0], [0], [1], [0, 0, 1, 1], [], []>} : vector<8x128xbf16>, vector<128x512xbf16>, vector<8x512xf32> -> vector<8x512xf32>
    %221 = arith.addf %218, %220 : vector<8x512xf32>
    %222 = vector.extract_strided_slice %221 {offsets = [0, 0], sizes = [8, 128], strides = [1, 1]} : vector<8x512xf32> to vector<8x128xf32>
    %cst_85 = arith.constant 5.000000e-01 : f32
    %223 = vector.broadcast %cst_85 : f32 to vector<8x128xf32>
    %224 = arith.mulf %223, %222 : vector<8x128xf32>
    %225 = math.tanh %224 : vector<8x128xf32>
    %cst_86 = arith.constant 5.000000e-01 : f32
    %226 = vector.broadcast %cst_86 : f32 to vector<8x128xf32>
    %227 = arith.mulf %226, %225 : vector<8x128xf32>
    %cst_87 = arith.constant 5.000000e-01 : f32
    %228 = vector.broadcast %cst_87 : f32 to vector<8x128xf32>
    %229 = arith.addf %227, %228 : vector<8x128xf32>
    %230 = vector.extract_strided_slice %221 {offsets = [0, 128], sizes = [8, 128], strides = [1, 1]} : vector<8x512xf32> to vector<8x128xf32>
    %cst_88 = arith.constant 5.000000e-01 : f32
    %231 = vector.broadcast %cst_88 : f32 to vector<8x128xf32>
    %232 = arith.mulf %231, %230 : vector<8x128xf32>
    %233 = math.tanh %232 : vector<8x128xf32>
    %cst_89 = arith.constant 5.000000e-01 : f32
    %234 = vector.broadcast %cst_89 : f32 to vector<8x128xf32>
    %235 = arith.mulf %234, %233 : vector<8x128xf32>
    %cst_90 = arith.constant 5.000000e-01 : f32
    %236 = vector.broadcast %cst_90 : f32 to vector<8x128xf32>
    %237 = arith.addf %235, %236 : vector<8x128xf32>
    %238 = vector.extract_strided_slice %221 {offsets = [0, 256], sizes = [8, 128], strides = [1, 1]} : vector<8x512xf32> to vector<8x128xf32>
    %239 = math.tanh %238 : vector<8x128xf32>
    %240 = vector.extract_strided_slice %221 {offsets = [0, 384], sizes = [8, 128], strides = [1, 1]} : vector<8x512xf32> to vector<8x128xf32>
    %cst_91 = arith.constant 5.000000e-01 : f32
    %241 = vector.broadcast %cst_91 : f32 to vector<8x128xf32>
    %242 = arith.mulf %241, %240 : vector<8x128xf32>
    %243 = math.tanh %242 : vector<8x128xf32>
    %cst_92 = arith.constant 5.000000e-01 : f32
    %244 = vector.broadcast %cst_92 : f32 to vector<8x128xf32>
    %245 = arith.mulf %244, %243 : vector<8x128xf32>
    %cst_93 = arith.constant 5.000000e-01 : f32
    %246 = vector.broadcast %cst_93 : f32 to vector<8x128xf32>
    %247 = arith.addf %245, %246 : vector<8x128xf32>
    %248 = arith.mulf %237, %209 : vector<8x128xf32>
    %249 = arith.mulf %229, %239 : vector<8x128xf32>
    %250 = arith.addf %248, %249 : vector<8x128xf32>
    %251 = math.tanh %250 : vector<8x128xf32>
    %252 = arith.mulf %247, %251 : vector<8x128xf32>
    %253 = arith.index_cast %c5_i32 : i32 to index
    %c0_94 = arith.constant 0 : index
    %c0_95 = arith.constant 0 : index
    %254 = vector.load %arg11[%253, %c0_94, %c0_95] : memref<8x8x128xf32, #tpu.memory_space<vmem>>, vector<1x8x128xf32>
    %255 = vector.shape_cast %254 : vector<1x8x128xf32> to vector<8x128xf32>
    %256 = vector.shape_cast %252 : vector<8x128xf32> to vector<1x8x128xf32>
    tpu.vector_store %arg11[%253, %c0_94, %c0_95], %256 {strides = array<i32>} : memref<8x8x128xf32, #tpu.memory_space<vmem>>, vector<1x8x128xf32>,
    %c6_i32 = arith.constant 6 : i32
    %257 = arith.index_cast %c6_i32 : i32 to index
    %c0_96 = arith.constant 0 : index
    %c0_97 = arith.constant 0 : index
    %258 = vector.load %arg10[%257, %c0_96, %c0_97] : memref<8x8x512xf32, #tpu.memory_space<vmem>>, vector<1x8x512xf32>
    %259 = vector.shape_cast %258 : vector<1x8x512xf32> to vector<8x512xf32>
    %260 = arith.truncf %252 : vector<8x128xf32> to vector<8x128xbf16>
    %cst_98 = arith.constant dense<0.000000e+00> : vector<8x512xf32>
    %261 = tpu.matmul %260, %9, %cst_98 {dimension_numbers = #tpu.dot_dimension_numbers<[1], [0], [0], [1], [0, 0, 1, 1], [], []>} : vector<8x128xbf16>, vector<128x512xbf16>, vector<8x512xf32> -> vector<8x512xf32>
    %262 = arith.addf %259, %261 : vector<8x512xf32>
    %263 = vector.extract_strided_slice %262 {offsets = [0, 0], sizes = [8, 128], strides = [1, 1]} : vector<8x512xf32> to vector<8x128xf32>
    %cst_99 = arith.constant 5.000000e-01 : f32
    %264 = vector.broadcast %cst_99 : f32 to vector<8x128xf32>
    %265 = arith.mulf %264, %263 : vector<8x128xf32>
    %266 = math.tanh %265 : vector<8x128xf32>
    %cst_100 = arith.constant 5.000000e-01 : f32
    %267 = vector.broadcast %cst_100 : f32 to vector<8x128xf32>
    %268 = arith.mulf %267, %266 : vector<8x128xf32>
    %cst_101 = arith.constant 5.000000e-01 : f32
    %269 = vector.broadcast %cst_101 : f32 to vector<8x128xf32>
    %270 = arith.addf %268, %269 : vector<8x128xf32>
    %271 = vector.extract_strided_slice %262 {offsets = [0, 128], sizes = [8, 128], strides = [1, 1]} : vector<8x512xf32> to vector<8x128xf32>
    %cst_102 = arith.constant 5.000000e-01 : f32
    %272 = vector.broadcast %cst_102 : f32 to vector<8x128xf32>
    %273 = arith.mulf %272, %271 : vector<8x128xf32>
    %274 = math.tanh %273 : vector<8x128xf32>
    %cst_103 = arith.constant 5.000000e-01 : f32
    %275 = vector.broadcast %cst_103 : f32 to vector<8x128xf32>
    %276 = arith.mulf %275, %274 : vector<8x128xf32>
    %cst_104 = arith.constant 5.000000e-01 : f32
    %277 = vector.broadcast %cst_104 : f32 to vector<8x128xf32>
    %278 = arith.addf %276, %277 : vector<8x128xf32>
    %279 = vector.extract_strided_slice %262 {offsets = [0, 256], sizes = [8, 128], strides = [1, 1]} : vector<8x512xf32> to vector<8x128xf32>
    %280 = math.tanh %279 : vector<8x128xf32>
    %281 = vector.extract_strided_slice %262 {offsets = [0, 384], sizes = [8, 128], strides = [1, 1]} : vector<8x512xf32> to vector<8x128xf32>
    %cst_105 = arith.constant 5.000000e-01 : f32
    %282 = vector.broadcast %cst_105 : f32 to vector<8x128xf32>
    %283 = arith.mulf %282, %281 : vector<8x128xf32>
    %284 = math.tanh %283 : vector<8x128xf32>
    %cst_106 = arith.constant 5.000000e-01 : f32
    %285 = vector.broadcast %cst_106 : f32 to vector<8x128xf32>
    %286 = arith.mulf %285, %284 : vector<8x128xf32>
    %cst_107 = arith.constant 5.000000e-01 : f32
    %287 = vector.broadcast %cst_107 : f32 to vector<8x128xf32>
    %288 = arith.addf %286, %287 : vector<8x128xf32>
    %289 = arith.mulf %278, %250 : vector<8x128xf32>
    %290 = arith.mulf %270, %280 : vector<8x128xf32>
    %291 = arith.addf %289, %290 : vector<8x128xf32>
    %292 = math.tanh %291 : vector<8x128xf32>
    %293 = arith.mulf %288, %292 : vector<8x128xf32>
    %294 = arith.index_cast %c6_i32 : i32 to index
    %c0_108 = arith.constant 0 : index
    %c0_109 = arith.constant 0 : index
    %295 = vector.load %arg11[%294, %c0_108, %c0_109] : memref<8x8x128xf32, #tpu.memory_space<vmem>>, vector<1x8x128xf32>
    %296 = vector.shape_cast %295 : vector<1x8x128xf32> to vector<8x128xf32>
    %297 = vector.shape_cast %293 : vector<8x128xf32> to vector<1x8x128xf32>
    tpu.vector_store %arg11[%294, %c0_108, %c0_109], %297 {strides = array<i32>} : memref<8x8x128xf32, #tpu.memory_space<vmem>>, vector<1x8x128xf32>,
    %c7_i32 = arith.constant 7 : i32
    %298 = arith.index_cast %c7_i32 : i32 to index
    %c0_110 = arith.constant 0 : index
    %c0_111 = arith.constant 0 : index
    %299 = vector.load %arg10[%298, %c0_110, %c0_111] : memref<8x8x512xf32, #tpu.memory_space<vmem>>, vector<1x8x512xf32>
    %300 = vector.shape_cast %299 : vector<1x8x512xf32> to vector<8x512xf32>
    %301 = arith.truncf %293 : vector<8x128xf32> to vector<8x128xbf16>
    %cst_112 = arith.constant dense<0.000000e+00> : vector<8x512xf32>
    %302 = tpu.matmul %301, %9, %cst_112 {dimension_numbers = #tpu.dot_dimension_numbers<[1], [0], [0], [1], [0, 0, 1, 1], [], []>} : vector<8x128xbf16>, vector<128x512xbf16>, vector<8x512xf32> -> vector<8x512xf32>
    %303 = arith.addf %300, %302 : vector<8x512xf32>
    %304 = vector.extract_strided_slice %303 {offsets = [0, 0], sizes = [8, 128], strides = [1, 1]} : vector<8x512xf32> to vector<8x128xf32>
    %cst_113 = arith.constant 5.000000e-01 : f32
    %305 = vector.broadcast %cst_113 : f32 to vector<8x128xf32>
    %306 = arith.mulf %305, %304 : vector<8x128xf32>
    %307 = math.tanh %306 : vector<8x128xf32>
    %cst_114 = arith.constant 5.000000e-01 : f32
    %308 = vector.broadcast %cst_114 : f32 to vector<8x128xf32>
    %309 = arith.mulf %308, %307 : vector<8x128xf32>
    %cst_115 = arith.constant 5.000000e-01 : f32
    %310 = vector.broadcast %cst_115 : f32 to vector<8x128xf32>
    %311 = arith.addf %309, %310 : vector<8x128xf32>
    %312 = vector.extract_strided_slice %303 {offsets = [0, 128], sizes = [8, 128], strides = [1, 1]} : vector<8x512xf32> to vector<8x128xf32>
    %cst_116 = arith.constant 5.000000e-01 : f32
    %313 = vector.broadcast %cst_116 : f32 to vector<8x128xf32>
    %314 = arith.mulf %313, %312 : vector<8x128xf32>
    %315 = math.tanh %314 : vector<8x128xf32>
    %cst_117 = arith.constant 5.000000e-01 : f32
    %316 = vector.broadcast %cst_117 : f32 to vector<8x128xf32>
    %317 = arith.mulf %316, %315 : vector<8x128xf32>
    %cst_118 = arith.constant 5.000000e-01 : f32
    %318 = vector.broadcast %cst_118 : f32 to vector<8x128xf32>
    %319 = arith.addf %317, %318 : vector<8x128xf32>
    %320 = vector.extract_strided_slice %303 {offsets = [0, 256], sizes = [8, 128], strides = [1, 1]} : vector<8x512xf32> to vector<8x128xf32>
    %321 = math.tanh %320 : vector<8x128xf32>
    %322 = vector.extract_strided_slice %303 {offsets = [0, 384], sizes = [8, 128], strides = [1, 1]} : vector<8x512xf32> to vector<8x128xf32>
    %cst_119 = arith.constant 5.000000e-01 : f32
    %323 = vector.broadcast %cst_119 : f32 to vector<8x128xf32>
    %324 = arith.mulf %323, %322 : vector<8x128xf32>
    %325 = math.tanh %324 : vector<8x128xf32>
    %cst_120 = arith.constant 5.000000e-01 : f32
    %326 = vector.broadcast %cst_120 : f32 to vector<8x128xf32>
    %327 = arith.mulf %326, %325 : vector<8x128xf32>
    %cst_121 = arith.constant 5.000000e-01 : f32
    %328 = vector.broadcast %cst_121 : f32 to vector<8x128xf32>
    %329 = arith.addf %327, %328 : vector<8x128xf32>
    %330 = arith.mulf %319, %291 : vector<8x128xf32>
    %331 = arith.mulf %311, %321 : vector<8x128xf32>
    %332 = arith.addf %330, %331 : vector<8x128xf32>
    %333 = math.tanh %332 : vector<8x128xf32>
    %334 = arith.mulf %329, %333 : vector<8x128xf32>
    %335 = arith.index_cast %c7_i32 : i32 to index
    %c0_122 = arith.constant 0 : index
    %c0_123 = arith.constant 0 : index
    %336 = vector.load %arg11[%335, %c0_122, %c0_123] : memref<8x8x128xf32, #tpu.memory_space<vmem>>, vector<1x8x128xf32>
    %337 = vector.shape_cast %336 : vector<1x8x128xf32> to vector<8x128xf32>
    %338 = vector.shape_cast %334 : vector<8x128xf32> to vector<1x8x128xf32>
    tpu.vector_store %arg11[%335, %c0_122, %c0_123], %338 {strides = array<i32>} : memref<8x8x128xf32, #tpu.memory_space<vmem>>, vector<1x8x128xf32>,
    %c8_i32 = arith.constant 8 : i32
    %c0_124 = arith.constant 0 : index
    %c0_125 = arith.constant 0 : index
    %c0_126 = arith.constant 0 : index
    %339 = vector.load %arg11[%c0_124, %c0_125, %c0_126] : memref<8x8x128xf32, #tpu.memory_space<vmem>>, vector<8x8x128xf32>
    %340 = vector.shape_cast %339 : vector<8x8x128xf32> to vector<64x128xf32>
    %341 = arith.truncf %340 : vector<64x128xf32> to vector<64x128xbf16>
    %c0_127 = arith.constant 0 : index
    %c0_128 = arith.constant 0 : index
    %342 = vector.load %arg5[%c0_127, %c0_128] : memref<128x64xbf16, #tpu.memory_space<vmem>>, vector<128x64xbf16>
    %cst_129 = arith.constant dense<0.000000e+00> : vector<64x64xf32>
    %343 = tpu.matmul %341, %342, %cst_129 {dimension_numbers = #tpu.dot_dimension_numbers<[1], [0], [0], [1], [0, 0, 1, 1], [], []>} : vector<64x128xbf16>, vector<128x64xbf16>, vector<64x64xf32> -> vector<64x64xf32>
    %c0_130 = arith.constant 0 : index
    %c0_131 = arith.constant 0 : index
    %344 = vector.load %arg6[%c0_130, %c0_131] : memref<1x64xf32, #tpu.memory_space<vmem>>, vector<1x64xf32>
    %345 = vector.broadcast %344 : vector<1x64xf32> to vector<64x64xf32>
    %346 = arith.addf %343, %345 : vector<64x64xf32>
    %cst_132 = arith.constant 0.000000e+00 : f32
    %347 = vector.broadcast %cst_132 : f32 to vector<64x64xf32>
    %348 = arith.cmpf oge, %346, %347 : vector<64x64xf32>
    %cst_133 = arith.constant 1.000000e-01 : f32
    %349 = vector.broadcast %cst_133 : f32 to vector<64x64xf32>
    %350 = arith.mulf %349, %346 : vector<64x64xf32>
    %351 = arith.select %348, %346, %350 : vector<64x64xi1>, vector<64x64xf32>
    %352 = vector.shape_cast %351 : vector<64x64xf32> to vector<8x8x64xf32>
    %c0_134 = arith.constant 0 : index
    %c0_135 = arith.constant 0 : index
    %353 = vector.load %arg7[%c0_134, %c0_135] : memref<1x64xf32, #tpu.memory_space<vmem>>, vector<1x64xf32>
    %354 = vector.shape_cast %353 : vector<1x64xf32> to vector<1x1x64xf32>
    %355 = vector.broadcast %354 : vector<1x1x64xf32> to vector<8x8x64xf32>
    %356 = arith.mulf %352, %355 : vector<8x8x64xf32>
    %cst_136 = arith.constant dense<0.000000e+00> : vector<8x8xf32>
    %357 = vector.multi_reduction <add>, %356, %cst_136 [2] : vector<8x8x64xf32> to vector<8x8xf32>
    %358 = vector.shape_cast %357 : vector<8x8xf32> to vector<8x8x1xf32>
    %c0_137 = arith.constant 0 : index
    %c0_138 = arith.constant 0 : index
    %359 = vector.load %arg8[%c0_137, %c0_138] : memref<1x1xf32, #tpu.memory_space<vmem>>, vector<1x1xf32>
    %360 = vector.shape_cast %359 : vector<1x1xf32> to vector<1x1x1xf32>
    %361 = vector.broadcast %360 : vector<1x1x1xf32> to vector<8x8x1xf32>
    %362 = arith.addf %358, %361 : vector<8x8x1xf32>
    %cst_139 = arith.constant 0.000000e+00 : f32
    %363 = vector.broadcast %cst_139 : f32 to vector<8x8x1xf32>
    %364 = arith.cmpf oge, %362, %363 : vector<8x8x1xf32>
    %cst_140 = arith.constant 1.000000e-01 : f32
    %365 = vector.broadcast %cst_140 : f32 to vector<8x8x1xf32>
    %366 = arith.mulf %365, %362 : vector<8x8x1xf32>
    %367 = arith.select %364, %362, %366 : vector<8x8x1xi1>, vector<8x8x1xf32>
    %c0_141 = arith.constant 0 : index
    %c0_142 = arith.constant 0 : index
    %c0_143 = arith.constant 0 : index
    %368 = vector.load %arg9[%c0_141, %c0_142, %c0_143] : memref<8x8x1xf32, #tpu.memory_space<vmem>>, vector<8x8x1xf32>
    tpu.vector_store %arg9[%c0_141, %c0_142, %c0_143], %367 {strides = array<i32>} : memref<8x8x1xf32, #tpu.memory_space<vmem>>, vector<8x8x1xf32>,
    return
  }
  func.func @transform_0(%arg0: i32) -> (i32, i32, i32) {
    %c0_i32 = arith.constant 0 : i32
    %c0_i32_0 = arith.constant 0 : i32
    %c0_i32_1 = arith.constant 0 : i32
    return %c0_i32, %arg0, %c0_i32_0 : i32, i32, i32
  }
  func.func @transform_1(%arg0: i32) -> (i32, i32) {
    %c0_i32 = arith.constant 0 : i32
    %c0_i32_0 = arith.constant 0 : i32
    %c0_i32_1 = arith.constant 0 : i32
    return %c0_i32, %c0_i32_0 : i32, i32
  }
  func.func @transform_2(%arg0: i32) -> (i32, i32) {
    %c0_i32 = arith.constant 0 : i32
    %c0_i32_0 = arith.constant 0 : i32
    %c0_i32_1 = arith.constant 0 : i32
    return %c0_i32, %c0_i32_0 : i32, i32
  }
  func.func @transform_3(%arg0: i32) -> (i32, i32) {
    %c0_i32 = arith.constant 0 : i32
    %c0_i32_0 = arith.constant 0 : i32
    %c0_i32_1 = arith.constant 0 : i32
    return %c0_i32, %c0_i32_0 : i32, i32
  }
  func.func @transform_4(%arg0: i32) -> (i32, i32) {
    %c0_i32 = arith.constant 0 : i32
    %c0_i32_0 = arith.constant 0 : i32
    %c0_i32_1 = arith.constant 0 : i32
    return %c0_i32, %c0_i32_0 : i32, i32
  }
  func.func @transform_5(%arg0: i32) -> (i32, i32) {
    %c0_i32 = arith.constant 0 : i32
    %c0_i32_0 = arith.constant 0 : i32
    %c0_i32_1 = arith.constant 0 : i32
    return %c0_i32, %c0_i32_0 : i32, i32
  }
  func.func @transform_6(%arg0: i32) -> (i32, i32) {
    %c0_i32 = arith.constant 0 : i32
    %c0_i32_0 = arith.constant 0 : i32
    %c0_i32_1 = arith.constant 0 : i32
    return %c0_i32, %c0_i32_0 : i32, i32
  }
  func.func @transform_7(%arg0: i32) -> (i32, i32) {
    %c0_i32 = arith.constant 0 : i32
    %c0_i32_0 = arith.constant 0 : i32
    %c0_i32_1 = arith.constant 0 : i32
    return %c0_i32, %c0_i32_0 : i32, i32
  }
  func.func @transform_8(%arg0: i32) -> (i32, i32, i32) {
    %c0_i32 = arith.constant 0 : i32
    %c0_i32_0 = arith.constant 0 : i32
    %c0_i32_1 = arith.constant 0 : i32
    return %c0_i32, %arg0, %c0_i32_0 : i32, i32, i32
  }
}

</mosaic_0001>

<llo_original>
// kernel: lstm_mlp_forward.1
$region0: #{lstm_mlp_forward.1}
  #allocation0 [shape = 'u32[]', space=smem, size = 0x4, offset = 0x4, fixed_abs, tag = 'smem constant byte address 0x4 - core index']
  #allocation1 [shape = 'u32[144,128]{1,0:T(1,128)}', space=vmem, size = 0x12000, scoped, tag = 'internal scratch']
  #allocation2 [shape = 'f32[8,8,512]{2,1,0:T(8,128)}', space=vmem, size = 0x20000, scoped, tag = 'scratch operand']
  #allocation3 [shape = 'f32[8,8,128]{2,1,0:T(8,128)}', space=vmem, size = 0x8000, scoped, tag = 'scratch operand']
  #allocation4 [shape = 'f32[1,1]{1,0:T(1,128)S(1)}', space=vmem, size = 0x200, scoped, tag = 'scoped memory for lstm_mlp_forward.1']
  %s0 = inlined_call_operand.vmem [shape: f32[8,8,16], index: 0, kind: input, shape index: {}]
  %s1 = inlined_call_operand.vmem [shape: f32[16,512], index: 1, kind: input, shape index: {}]
  %s2 = inlined_call_operand.vmem [shape: f32[1,512], index: 2, kind: input, shape index: {}]
  %s3 = inlined_call_operand.hbm [shape: bf16[128,512], index: 3, kind: input, shape index: {}]
  %s4 = inlined_call_operand.vmem [shape: bf16[128,64], index: 4, kind: input, shape index: {}]
  %s5 = inlined_call_operand.vmem [shape: f32[1,64], index: 5, kind: input, shape index: {}]
  %s6 = inlined_call_operand.vmem [shape: f32[1,64], index: 6, kind: input, shape index: {}]
  %s7 = inlined_call_operand.<no memory space> [shape: f32[1,1], index: 7, kind: input, shape index: {}]
  %s8 = inlined_call_operand.vmem [shape: f32[8,8,1], index: 8, kind: output, shape index: {}]
  %s9 = sld [smem:[#allocation0]]
  $region46: #{lstm_mlp_forward.1} parent=0
    _
  %s11 = ssub.s32 1, %s9
  %s12 = scalar_select 0, %s11, %s9
  %v13 = vstv %s7
  %14 = vst [vmem:[#allocation4] sm:$0x1] %v13
  $region1: #{lstm_mlp_forward.1} parent=0
    #allocation5 [shape = 'u8[131072]{0}', space=vmem, size = 0x20000, scoped, tag = 'input window, operand 3, single buffered']
    #allocation6 [shape = 's32[1]{0}', space=sflag, size = 0x4, scoped, tag = 'scoped memory for lstm_mlp_forward.1']
    %15 = vsyncpa [#allocation6], 0
    // Predicated region
    $region2: #{lstm_mlp_forward.1} parent=1 // pred_check
      _
    $region3: #{lstm_mlp_forward.1} parent=1 // pred_check_branch
      %17 = sbr.rel (0) target = $region5
    $region4: #{lstm_mlp_forward.1} parent=1 // pred_region
      _
    $region5: #{lstm_mlp_forward.1} parent=1 // pred_fallthru
      _
    // Predicated region
    $region6: #{lstm_mlp_forward.1} parent=1 // pred_check
      _
    $region7: #{lstm_mlp_forward.1} parent=1 // pred_check_branch
      %19 = sbr.rel (0) target = $region9
    $region8: #{lstm_mlp_forward.1} parent=1 // pred_region
      _
    $region9: #{lstm_mlp_forward.1} parent=1 // pred_fallthru
      _
    // Predicated region
    $region10: #{lstm_mlp_forward.1} parent=1 // pred_check
      _
    $region11: #{lstm_mlp_forward.1} parent=1 // pred_check_branch
      %21 = sbr.rel (0) target = $region13
    $region12: #{lstm_mlp_forward.1} parent=1 // pred_region
      _
    $region13: #{lstm_mlp_forward.1} parent=1 // pred_fallthru
      _
    // Predicated region
    $region14: #{lstm_mlp_forward.1} parent=1 // pred_check
      _
    $region15: #{lstm_mlp_forward.1} parent=1 // pred_check_branch
      %23 = sbr.rel (0) target = $region17
    $region16: #{lstm_mlp_forward.1} parent=1 // pred_region
      %s25 = ssub.s32 4096, 4096
      %26 = vsyncadd [#allocation6], %s25
      %s27 = sshll.u32 [#allocation5], 4
      %s28 = int_to_ptr.vmem [resolvable:$true] %s27
      %33 = dma.hbm_to_vmem [thread:$0]  %s3, 4096, %s28, [#allocation6], 256, 256, 16
    $region17: #{lstm_mlp_forward.1} parent=1 // pred_fallthru
      _
    // Predicated region
    $region18: #{lstm_mlp_forward.1} parent=1 // pred_check
      _
    $region19: #{lstm_mlp_forward.1} parent=1 // pred_check_branch
      %35 = sbr.rel (0) target = $region21
    $region20: #{lstm_mlp_forward.1} parent=1 // pred_region
      _
    $region21: #{lstm_mlp_forward.1} parent=1 // pred_fallthru
      _
    // Predicated region
    $region22: #{lstm_mlp_forward.1} parent=1 // pred_check
      _
    $region23: #{lstm_mlp_forward.1} parent=1 // pred_check_branch
      %37 = sbr.rel (0) target = $region25
    $region24: #{lstm_mlp_forward.1} parent=1 // pred_region
      _
    $region25: #{lstm_mlp_forward.1} parent=1 // pred_fallthru
      _
    // Predicated region
    $region26: #{lstm_mlp_forward.1} parent=1 // pred_check
      _
    $region27: #{lstm_mlp_forward.1} parent=1 // pred_check_branch
      %39 = sbr.rel (0) target = $region29
    $region28: #{lstm_mlp_forward.1} parent=1 // pred_region
      _
    $region29: #{lstm_mlp_forward.1} parent=1 // pred_fallthru
      _
    // Predicated region
    $region30: #{lstm_mlp_forward.1} parent=1 // pred_check
      _
    $region31: #{lstm_mlp_forward.1} parent=1 // pred_check_branch
      %41 = sbr.rel (0) target = $region33
    $region32: #{lstm_mlp_forward.1} parent=1 // pred_region
      _
    $region33: #{lstm_mlp_forward.1} parent=1 // pred_fallthru
      _
    // Predicated region
    $region34: #{lstm_mlp_forward.1} parent=1 // pred_check
      _
    $region35: #{lstm_mlp_forward.1} parent=1 // pred_check_branch
      %43 = sbr.rel (0) target = $region37
    $region36: #{lstm_mlp_forward.1} parent=1 // pred_region
      %44 = dma.done [#allocation6], 4096
    $region37: #{lstm_mlp_forward.1} parent=1 // pred_fallthru
      _
    %v46 = vld [vmem:[%s0] sm:$0xff]
    %v47 = vld [vmem:[%s0 + $0x8] sm:$0xff]
    %v48 = vld [vmem:[%s0 + $0x10] sm:$0xff]
    %v49 = vld [vmem:[%s0 + $0x18] sm:$0xff]
    %v50 = vld [vmem:[%s0 + $0x20] sm:$0xff]
    %v51 = vld [vmem:[%s0 + $0x28] sm:$0xff]
    %v52 = vld [vmem:[%s0 + $0x30] sm:$0xff]
    %v53 = vld [vmem:[%s0 + $0x38] sm:$0xff]
    %v54 = vld [vmem:[%s1] sm:$0xff]
    %v55 = vld [vmem:[%s1 + $0x8] sm:$0xff]
    %v56 = vld [vmem:[%s1 + $0x10] sm:$0xff]
    %v57 = vld [vmem:[%s1 + $0x18] sm:$0xff]
    %v58 = vld [vmem:[%s1 + $0x20] sm:$0xff]
    %v59 = vld [vmem:[%s1 + $0x28] sm:$0xff]
    %v60 = vld [vmem:[%s1 + $0x30] sm:$0xff]
    %v61 = vld [vmem:[%s1 + $0x38] sm:$0xff]
    %v62 = vld [vmem:[%s2] sm:$0xf]
    %v64 = vlaneseq
    %v65 = vshrl.u32 %v64, 7
    %v66 = vsub.s32 0, %v65
    %v67 = vrot.slane %v62, %v66
    %v68 = vlaneseq
    %v69 = vshrl.u32 %v68, 7
    %v70 = vsub.s32 1, %v69
    %v71 = vrot.slane %v62, %v70
    %v72 = vlaneseq
    %v73 = vshrl.u32 %v72, 7
    %v74 = vsub.s32 2, %v73
    %v75 = vrot.slane %v62, %v74
    %v76 = vlaneseq
    %v77 = vshrl.u32 %v76, 7
    %v78 = vsub.s32 3, %v77
    %v79 = vrot.slane %v62, %v78
    %vm84 = vcmask 130048
    %v86 = vsel %vm84, %v46, 0
    %v89 = vsel %vm84, %v47, 0
    %v92 = vsel %vm84, %v48, 0
    %v95 = vsel %vm84, %v49, 0
    %v98 = vsel %vm84, %v50, 0
    %v101 = vsel %vm84, %v51, 0
    %v104 = vsel %vm84, %v52, 0
    %v107 = vsel %vm84, %v53, 0
    %109 = vmatprep.subr.mxu0 %v55
    %110 = vmatpush1.msra.mxu0 %v54
    %111 = vmatprep.subr.mxu0 %v59
    %112 = vmatpush1.msra.mxu0 %v58
    %113 = vmatprep.subr.mxu0 0.0
    %114 = vmatpush1.msra.mxu0 0.0
    %115 = vmatprep.subr.mxu0 0.0
    %116 = vmatpush1.msra.mxu0 0.0
    %117 = vmatprep.subr.mxu0 0.0
    %118 = vmatpush1.msra.mxu0 0.0
    %119 = vmatprep.subr.mxu0 0.0
    %120 = vmatpush1.msra.mxu0 0.0
    %121 = vmatprep.subr.mxu0 0.0
    %122 = vmatpush1.msra.mxu0 0.0
    %123 = vmatprep.subr.mxu0 0.0
    %124 = vmatpush1.msra.mxu0 0.0
    %125 = vmatprep.subr.mxu0 0.0
    %126 = vmatpush1.msra.mxu0 0.0
    %127 = vmatprep.subr.mxu0 0.0
    %128 = vmatpush1.msra.mxu0 0.0
    %129 = vmatprep.subr.mxu0 0.0
    %130 = vmatpush1.msra.mxu0 0.0
    %131 = vmatprep.subr.mxu0 0.0
    %132 = vmatpush1.msra.mxu0 0.0
    %133 = vmatprep.subr.mxu0 0.0
    %134 = vmatpush1.msra.mxu0 0.0
    %135 = vmatprep.subr.mxu0 0.0
    %136 = vmatpush1.msra.mxu0 0.0
    %137 = vmatprep.subr.mxu0 0.0
    %138 = vmatpush1.msra.mxu0 0.0
    %139 = vmatprep.subr.mxu0 0.0
    %140 = vmatpush1.msra.mxu0 0.0
    %141 = vmatprep.subr.mxu0 0.0
    %142 = vmatpush1.msra.mxu0 0.0
    %143 = vmatprep.subr.mxu0 0.0
    %144 = vmatpush1.msra.mxu0 0.0
    %145 = vmatprep.subr.mxu0 0.0
    %146 = vmatpush1.msra.mxu0 0.0
    %147 = vmatprep.subr.mxu0 0.0
    %148 = vmatpush1.msra.mxu0 0.0
    %149 = vmatprep.subr.mxu0 0.0
    %150 = vmatpush1.msra.mxu0 0.0
    %151 = vmatprep.subr.mxu0 0.0
    %152 = vmatpush1.msra.mxu0 0.0
    %153 = vmatprep.subr.mxu0 0.0
    %154 = vmatpush1.msra.mxu0 0.0
    %155 = vmatprep.subr.mxu0 0.0
    %156 = vmatpush1.msra.mxu0 0.0
    %157 = vmatprep.subr.mxu0 0.0
    %158 = vmatpush1.msra.mxu0 0.0
    %159 = vmatprep.subr.mxu0 0.0
    %160 = vmatpush1.msra.mxu0 0.0
    %161 = vmatprep.subr.mxu0 0.0
    %162 = vmatpush1.msra.mxu0 0.0
    %163 = vmatprep.subr.mxu0 0.0
    %164 = vmatpush1.msra.mxu0 0.0
    %165 = vmatprep.subr.mxu0 0.0
    %166 = vmatpush1.msra.mxu0 0.0
    %167 = vmatprep.subr.mxu0 0.0
    %168 = vmatpush1.msra.mxu0 0.0
    %169 = vmatprep.subr.mxu0 0.0
    %170 = vmatpush1.msra.mxu0 0.0
    %171 = vmatprep.subr.mxu0 0.0
    %172 = vmatpush1.msra.mxu0 0.0
    %173 = vmatprep.mubr.f32.mxu0 0.0
    %174 = vmatmul.mubr.f32.gmra.mrb[0].mxu0 %v86
    %v175 = vpop.f32.mrb[0].mxu0
    %v176 = vadd.f32 %v67, %v175
    %v177 = vpop.f32.mrb[0].mxu0
    %v178 = vadd.f32 %v71, %v177
    %179 = vmatprep.mubr.f32.mxu0 0.0
    %180 = vmatmul.mubr.f32.gmra.mrb[0].mxu0 %v89
    %v181 = vpop.f32.mrb[0].mxu0
    %v182 = vadd.f32 %v67, %v181
    %v183 = vpop.f32.mrb[0].mxu0
    %v184 = vadd.f32 %v71, %v183
    %185 = vmatprep.mubr.f32.mxu0 0.0
    %186 = vmatmul.mubr.f32.gmra.mrb[0].mxu0 %v92
    %v187 = vpop.f32.mrb[0].mxu0
    %v188 = vadd.f32 %v67, %v187
    %v189 = vpop.f32.mrb[0].mxu0
    %v190 = vadd.f32 %v71, %v189
    %191 = vmatprep.mubr.f32.mxu0 0.0
    %192 = vmatmul.mubr.f32.gmra.mrb[0].mxu0 %v95
    %v193 = vpop.f32.mrb[0].mxu0
    %v194 = vadd.f32 %v67, %v193
    %v195 = vpop.f32.mrb[0].mxu0
    %v196 = vadd.f32 %v71, %v195
    %197 = vmatprep.mubr.f32.mxu0 0.0
    %198 = vmatmul.mubr.f32.gmra.mrb[0].mxu0 %v98
    %v199 = vpop.f32.mrb[0].mxu0
    %v200 = vadd.f32 %v67, %v199
    %v201 = vpop.f32.mrb[0].mxu0
    %v202 = vadd.f32 %v71, %v201
    %203 = vmatprep.mubr.f32.mxu0 0.0
    %204 = vmatmul.mubr.f32.gmra.mrb[0].mxu0 %v101
    %v205 = vpop.f32.mrb[0].mxu0
    %v206 = vadd.f32 %v67, %v205
    %v207 = vpop.f32.mrb[0].mxu0
    %v208 = vadd.f32 %v71, %v207
    %209 = vmatprep.mubr.f32.mxu0 0.0
    %210 = vmatmul.mubr.f32.gmra.mrb[0].mxu0 %v104
    %v211 = vpop.f32.mrb[0].mxu0
    %v212 = vadd.f32 %v67, %v211
    %v213 = vpop.f32.mrb[0].mxu0
    %v214 = vadd.f32 %v71, %v213
    %215 = vmatprep.mubr.f32.mxu0 0.0
    %216 = vmatmul.mubr.f32.gmra.mrb[0].mxu0 %v107
    %v217 = vpop.f32.mrb[0].mxu0
    %v218 = vadd.f32 %v67, %v217
    %v219 = vpop.f32.mrb[0].mxu0
    %v220 = vadd.f32 %v71, %v219
    %221 = vdwg.mxu0
    %222 = vmatprep.subr.mxu0 %v57
    %223 = vmatpush1.msra.mxu0 %v56
    %224 = vmatprep.subr.mxu0 %v61
    %225 = vmatpush1.msra.mxu0 %v60
    %226 = vmatprep.subr.mxu0 0.0
    %227 = vmatpush1.msra.mxu0 0.0
    %228 = vmatprep.subr.mxu0 0.0
    %229 = vmatpush1.msra.mxu0 0.0
    %230 = vmatprep.subr.mxu0 0.0
    %231 = vmatpush1.msra.mxu0 0.0
    %232 = vmatprep.subr.mxu0 0.0
    %233 = vmatpush1.msra.mxu0 0.0
    %234 = vmatprep.subr.mxu0 0.0
    %235 = vmatpush1.msra.mxu0 0.0
    %236 = vmatprep.subr.mxu0 0.0
    %237 = vmatpush1.msra.mxu0 0.0
    %238 = vmatprep.subr.mxu0 0.0
    %239 = vmatpush1.msra.mxu0 0.0
    %240 = vmatprep.subr.mxu0 0.0
    %241 = vmatpush1.msra.mxu0 0.0
    %242 = vmatprep.subr.mxu0 0.0
    %243 = vmatpush1.msra.mxu0 0.0
    %244 = vmatprep.subr.mxu0 0.0
    %245 = vmatpush1.msra.mxu0 0.0
    %246 = vmatprep.subr.mxu0 0.0
    %247 = vmatpush1.msra.mxu0 0.0
    %248 = vmatprep.subr.mxu0 0.0
    %249 = vmatpush1.msra.mxu0 0.0
    %250 = vmatprep.subr.mxu0 0.0
    %251 = vmatpush1.msra.mxu0 0.0
    %252 = vmatprep.subr.mxu0 0.0
    %253 = vmatpush1.msra.mxu0 0.0
    %254 = vmatprep.subr.mxu0 0.0
    %255 = vmatpush1.msra.mxu0 0.0
    %256 = vmatprep.subr.mxu0 0.0
    %257 = vmatpush1.msra.mxu0 0.0
    %258 = vmatprep.subr.mxu0 0.0
    %259 = vmatpush1.msra.mxu0 0.0
    %260 = vmatprep.subr.mxu0 0.0
    %261 = vmatpush1.msra.mxu0 0.0
    %262 = vmatprep.subr.mxu0 0.0
    %263 = vmatpush1.msra.mxu0 0.0
    %264 = vmatprep.subr.mxu0 0.0
    %265 = vmatpush1.msra.mxu0 0.0
    %266 = vmatprep.subr.mxu0 0.0
    %267 = vmatpush1.msra.mxu0 0.0
    %268 = vmatprep.subr.mxu0 0.0
    %269 = vmatpush1.msra.mxu0 0.0
    %270 = vmatprep.subr.mxu0 0.0
    %271 = vmatpush1.msra.mxu0 0.0
    %272 = vmatprep.subr.mxu0 0.0
    %273 = vmatpush1.msra.mxu0 0.0
    %274 = vmatprep.subr.mxu0 0.0
    %275 = vmatpush1.msra.mxu0 0.0
    %276 = vmatprep.subr.mxu0 0.0
    %277 = vmatpush1.msra.mxu0 0.0
    %278 = vmatprep.subr.mxu0 0.0
    %279 = vmatpush1.msra.mxu0 0.0
    %280 = vmatprep.subr.mxu0 0.0
    %281 = vmatpush1.msra.mxu0 0.0
    %282 = vmatprep.subr.mxu0 0.0
    %283 = vmatpush1.msra.mxu0 0.0
    %284 = vmatprep.subr.mxu0 0.0
    %285 = vmatpush1.msra.mxu0 0.0
    %286 = vmatprep.mubr.f32.mxu0 0.0
    %287 = vmatmul.mubr.f32.gmra.mrb[0].mxu0 %v86
    %v288 = vpop.f32.mrb[0].mxu0
    %v289 = vadd.f32 %v75, %v288
    %v290 = vpop.f32.mrb[0].mxu0
    %v291 = vadd.f32 %v79, %v290
    %292 = vmatprep.mubr.f32.mxu0 0.0
    %293 = vmatmul.mubr.f32.gmra.mrb[0].mxu0 %v89
    %v294 = vpop.f32.mrb[0].mxu0
    %v295 = vadd.f32 %v75, %v294
    %v296 = vpop.f32.mrb[0].mxu0
    %v297 = vadd.f32 %v79, %v296
    %298 = vmatprep.mubr.f32.mxu0 0.0
    %299 = vmatmul.mubr.f32.gmra.mrb[0].mxu0 %v92
    %v300 = vpop.f32.mrb[0].mxu0
    %v301 = vadd.f32 %v75, %v300
    %v302 = vpop.f32.mrb[0].mxu0
    %v303 = vadd.f32 %v79, %v302
    %304 = vmatprep.mubr.f32.mxu0 0.0
    %305 = vmatmul.mubr.f32.gmra.mrb[0].mxu0 %v95
    %v306 = vpop.f32.mrb[0].mxu0
    %v307 = vadd.f32 %v75, %v306
    %v308 = vpop.f32.mrb[0].mxu0
    %v309 = vadd.f32 %v79, %v308
    %310 = vmatprep.mubr.f32.mxu0 0.0
    %311 = vmatmul.mubr.f32.gmra.mrb[0].mxu0 %v98
    %v312 = vpop.f32.mrb[0].mxu0
    %v313 = vadd.f32 %v75, %v312
    %v314 = vpop.f32.mrb[0].mxu0
    %v315 = vadd.f32 %v79, %v314
    %316 = vmatprep.mubr.f32.mxu0 0.0
    %317 = vmatmul.mubr.f32.gmra.mrb[0].mxu0 %v101
    %v318 = vpop.f32.mrb[0].mxu0
    %v319 = vadd.f32 %v75, %v318
    %v320 = vpop.f32.mrb[0].mxu0
    %v321 = vadd.f32 %v79, %v320
    %322 = vmatprep.mubr.f32.mxu0 0.0
    %323 = vmatmul.mubr.f32.gmra.mrb[0].mxu0 %v104
    %v324 = vpop.f32.mrb[0].mxu0
    %v325 = vadd.f32 %v75, %v324
    %v326 = vpop.f32.mrb[0].mxu0
    %v327 = vadd.f32 %v79, %v326
    %328 = vmatprep.mubr.f32.mxu0 0.0
    %329 = vmatmul.mubr.f32.gmra.mrb[0].mxu0 %v107
    %v330 = vpop.f32.mrb[0].mxu0
    %v331 = vadd.f32 %v75, %v330
    %v332 = vpop.f32.mrb[0].mxu0
    %v333 = vadd.f32 %v79, %v332
    %334 = vdwg.mxu0
    %335 = vst [vmem:[#allocation2] sm:$0xff] %v176
    %336 = vst [vmem:[#allocation2 + $0x8] sm:$0xff] %v178
    %337 = vst [vmem:[#allocation2 + $0x10] sm:$0xff] %v289
    %338 = vst [vmem:[#allocation2 + $0x18] sm:$0xff] %v291
    %339 = vst [vmem:[#allocation2 + $0x20] sm:$0xff] %v182
    %340 = vst [vmem:[#allocation2 + $0x28] sm:$0xff] %v184
    %341 = vst [vmem:[#allocation2 + $0x30] sm:$0xff] %v295
    %342 = vst [vmem:[#allocation2 + $0x38] sm:$0xff] %v297
    %343 = vst [vmem:[#allocation2 + $0x40] sm:$0xff] %v188
    %344 = vst [vmem:[#allocation2 + $0x48] sm:$0xff] %v190
    %345 = vst [vmem:[#allocation2 + $0x50] sm:$0xff] %v301
    %346 = vst [vmem:[#allocation2 + $0x58] sm:$0xff] %v303
    %347 = vst [vmem:[#allocation2 + $0x60] sm:$0xff] %v194
    %348 = vst [vmem:[#allocation2 + $0x68] sm:$0xff] %v196
    %349 = vst [vmem:[#allocation2 + $0x70] sm:$0xff] %v307
    %350 = vst [vmem:[#allocation2 + $0x78] sm:$0xff] %v309
    %351 = vst [vmem:[#allocation2 + $0x80] sm:$0xff] %v200
    %352 = vst [vmem:[#allocation2 + $0x88] sm:$0xff] %v202
    %353 = vst [vmem:[#allocation2 + $0x90] sm:$0xff] %v313
    %354 = vst [vmem:[#allocation2 + $0x98] sm:$0xff] %v315
    %355 = vst [vmem:[#allocation2 + $0xa0] sm:$0xff] %v206
    %356 = vst [vmem:[#allocation2 + $0xa8] sm:$0xff] %v208
    %357 = vst [vmem:[#allocation2 + $0xb0] sm:$0xff] %v319
    %358 = vst [vmem:[#allocation2 + $0xb8] sm:$0xff] %v321
    %359 = vst [vmem:[#allocation2 + $0xc0] sm:$0xff] %v212
    %360 = vst [vmem:[#allocation2 + $0xc8] sm:$0xff] %v214
    %361 = vst [vmem:[#allocation2 + $0xd0] sm:$0xff] %v325
    %362 = vst [vmem:[#allocation2 + $0xd8] sm:$0xff] %v327
    %363 = vst [vmem:[#allocation2 + $0xe0] sm:$0xff] %v218
    %364 = vst [vmem:[#allocation2 + $0xe8] sm:$0xff] %v220
    %365 = vst [vmem:[#allocation2 + $0xf0] sm:$0xff] %v331
    %366 = vst [vmem:[#allocation2 + $0xf8] sm:$0xff] %v333
    %v367 = vld [vmem:[#allocation5] sm:$0xff]
    %v368 = vld [vmem:[#allocation5 + $0x8] sm:$0xff]
    %v369 = vld [vmem:[#allocation5 + $0x10] sm:$0xff]
    %v370 = vld [vmem:[#allocation5 + $0x18] sm:$0xff]
    %v371 = vld [vmem:[#allocation5 + $0x20] sm:$0xff]
    %v372 = vld [vmem:[#allocation5 + $0x28] sm:$0xff]
    %v373 = vld [vmem:[#allocation5 + $0x30] sm:$0xff]
    %v374 = vld [vmem:[#allocation5 + $0x38] sm:$0xff]
    %v375 = vld [vmem:[#allocation5 + $0x40] sm:$0xff]
    %v376 = vld [vmem:[#allocation5 + $0x48] sm:$0xff]
    %v377 = vld [vmem:[#allocation5 + $0x50] sm:$0xff]
    %v378 = vld [vmem:[#allocation5 + $0x58] sm:$0xff]
    %v379 = vld [vmem:[#allocation5 + $0x60] sm:$0xff]
    %v380 = vld [vmem:[#allocation5 + $0x68] sm:$0xff]
    %v381 = vld [vmem:[#allocation5 + $0x70] sm:$0xff]
    %v382 = vld [vmem:[#allocation5 + $0x78] sm:$0xff]
    %v383 = vld [vmem:[#allocation5 + $0x80] sm:$0xff]
    %v384 = vld [vmem:[#allocation5 + $0x88] sm:$0xff]
    %v385 = vld [vmem:[#allocation5 + $0x90] sm:$0xff]
    %v386 = vld [vmem:[#allocation5 + $0x98] sm:$0xff]
    %v387 = vld [vmem:[#allocation5 + $0xa0] sm:$0xff]
    %v388 = vld [vmem:[#allocation5 + $0xa8] sm:$0xff]
    %v389 = vld [vmem:[#allocation5 + $0xb0] sm:$0xff]
    %v390 = vld [vmem:[#allocation5 + $0xb8] sm:$0xff]
    %v391 = vld [vmem:[#allocation5 + $0xc0] sm:$0xff]
    %v392 = vld [vmem:[#allocation5 + $0xc8] sm:$0xff]
    %v393 = vld [vmem:[#allocation5 + $0xd0] sm:$0xff]
    %v394 = vld [vmem:[#allocation5 + $0xd8] sm:$0xff]
    %v395 = vld [vmem:[#allocation5 + $0xe0] sm:$0xff]
    %v396 = vld [vmem:[#allocation5 + $0xe8] sm:$0xff]
    %v397 = vld [vmem:[#allocation5 + $0xf0] sm:$0xff]
    %v398 = vld [vmem:[#allocation5 + $0xf8] sm:$0xff]
    %v399 = vld [vmem:[#allocation2] sm:$0xff]
    %v400 = vld [vmem:[#allocation2 + $0x8] sm:$0xff]
    %v401 = vld [vmem:[#allocation2 + $0x10] sm:$0xff]
    %v402 = vld [vmem:[#allocation2 + $0x18] sm:$0xff]
    %v435 = vunpack.c.l.b16 %v367
    %v436 = vunpack.c.h.b16 %v367
    %v437 = vunpack.c.l.b16 %v368
    %v438 = vunpack.c.h.b16 %v368
    %v439 = vunpack.c.l.b16 %v369
    %v440 = vunpack.c.h.b16 %v369
    %v441 = vunpack.c.l.b16 %v370
    %v442 = vunpack.c.h.b16 %v370
    %v443 = vunpack.c.l.b16 %v371
    %v444 = vunpack.c.h.b16 %v371
    %v445 = vunpack.c.l.b16 %v372
    %v446 = vunpack.c.h.b16 %v372
    %v447 = vunpack.c.l.b16 %v373
    %v448 = vunpack.c.h.b16 %v373
    %v449 = vunpack.c.l.b16 %v374
    %v450 = vunpack.c.h.b16 %v374
    %v451 = vunpack.c.l.b16 %v375
    %v452 = vunpack.c.h.b16 %v375
    %v453 = vunpack.c.l.b16 %v376
    %v454 = vunpack.c.h.b16 %v376
    %v455 = vunpack.c.l.b16 %v377
    %v456 = vunpack.c.h.b16 %v377
    %v457 = vunpack.c.l.b16 %v378
    %v458 = vunpack.c.h.b16 %v378
    %v459 = vunpack.c.l.b16 %v379
    %v460 = vunpack.c.h.b16 %v379
    %v461 = vunpack.c.l.b16 %v380
    %v462 = vunpack.c.h.b16 %v380
    %v463 = vunpack.c.l.b16 %v381
    %v464 = vunpack.c.h.b16 %v381
    %v465 = vunpack.c.l.b16 %v382
    %v466 = vunpack.c.h.b16 %v382
    %v467 = vunpack.c.l.b16 %v383
    %v468 = vunpack.c.h.b16 %v383
    %v469 = vunpack.c.l.b16 %v384
    %v470 = vunpack.c.h.b16 %v384
    %v471 = vunpack.c.l.b16 %v385
    %v472 = vunpack.c.h.b16 %v385
    %v473 = vunpack.c.l.b16 %v386
    %v474 = vunpack.c.h.b16 %v386
    %v475 = vunpack.c.l.b16 %v387
    %v476 = vunpack.c.h.b16 %v387
    %v477 = vunpack.c.l.b16 %v388
    %v478 = vunpack.c.h.b16 %v388
    %v479 = vunpack.c.l.b16 %v389
    %v480 = vunpack.c.h.b16 %v389
    %v481 = vunpack.c.l.b16 %v390
    %v482 = vunpack.c.h.b16 %v390
    %v483 = vunpack.c.l.b16 %v391
    %v484 = vunpack.c.h.b16 %v391
    %v485 = vunpack.c.l.b16 %v392
    %v486 = vunpack.c.h.b16 %v392
    %v487 = vunpack.c.l.b16 %v393
    %v488 = vunpack.c.h.b16 %v393
    %v489 = vunpack.c.l.b16 %v394
    %v490 = vunpack.c.h.b16 %v394
    %v491 = vunpack.c.l.b16 %v395
    %v492 = vunpack.c.h.b16 %v395
    %v493 = vunpack.c.l.b16 %v396
    %v494 = vunpack.c.h.b16 %v396
    %v495 = vunpack.c.l.b16 %v397
    %v496 = vunpack.c.h.b16 %v397
    %v497 = vunpack.c.l.b16 %v398
    %v498 = vunpack.c.h.b16 %v398
    %v499 = vpack.c.b16 %v439, %v435
    %v500 = vpack.c.b16 %v440, %v436
    %v501 = vpack.c.b16 %v441, %v437
    %v502 = vpack.c.b16 %v442, %v438
    %v503 = vpack.c.b16 %v447, %v443
    %v504 = vpack.c.b16 %v448, %v444
    %v505 = vpack.c.b16 %v449, %v445
    %v506 = vpack.c.b16 %v450, %v446
    %v507 = vpack.c.b16 %v455, %v451
    %v508 = vpack.c.b16 %v456, %v452
    %v509 = vpack.c.b16 %v457, %v453
    %v510 = vpack.c.b16 %v458, %v454
    %v511 = vpack.c.b16 %v463, %v459
    %v512 = vpack.c.b16 %v464, %v460
    %v513 = vpack.c.b16 %v465, %v461
    %v514 = vpack.c.b16 %v466, %v462
    %v515 = vpack.c.b16 %v471, %v467
    %v516 = vpack.c.b16 %v472, %v468
    %v517 = vpack.c.b16 %v473, %v469
    %v518 = vpack.c.b16 %v474, %v470
    %v519 = vpack.c.b16 %v479, %v475
    %v520 = vpack.c.b16 %v480, %v476
    %v521 = vpack.c.b16 %v481, %v477
    %v522 = vpack.c.b16 %v482, %v478
    %v523 = vpack.c.b16 %v487, %v483
    %v524 = vpack.c.b16 %v488, %v484
    %v525 = vpack.c.b16 %v489, %v485
    %v526 = vpack.c.b16 %v490, %v486
    %v527 = vpack.c.b16 %v495, %v491
    %v528 = vpack.c.b16 %v496, %v492
    %v529 = vpack.c.b16 %v497, %v493
    %v530 = vpack.c.b16 %v498, %v494
    %563 = vmatprep.subr.bf16.mxu0 %v500
    %564 = vmatpush1.bf16.msra.mxu0 %v499
    %565 = vmatprep.subr.bf16.mxu0 %v504
    %566 = vmatpush1.bf16.msra.mxu0 %v503
    %567 = vmatprep.subr.bf16.mxu0 %v508
    %568 = vmatpush1.bf16.msra.mxu0 %v507
    %569 = vmatprep.subr.bf16.mxu0 %v512
    %570 = vmatpush1.bf16.msra.mxu0 %v511
    %571 = vmatprep.subr.bf16.mxu0 %v516
    %572 = vmatpush1.bf16.msra.mxu0 %v515
    %573 = vmatprep.subr.bf16.mxu0 %v520
    %574 = vmatpush1.bf16.msra.mxu0 %v519
    %575 = vmatprep.subr.bf16.mxu0 %v524
    %576 = vmatpush1.bf16.msra.mxu0 %v523
    %577 = vmatprep.subr.bf16.mxu0 %v528
    %578 = vmatpush1.bf16.msra.mxu0 %v527
    %579 = vmatprep.subr.bf16.mxu0 0
    %580 = vmatpush1.bf16.msra.mxu0 0
    %581 = vmatprep.subr.bf16.mxu0 0
    %582 = vmatpush1.bf16.msra.mxu0 0
    %583 = vmatprep.subr.bf16.mxu0 0
    %584 = vmatpush1.bf16.msra.mxu0 0
    %585 = vmatprep.subr.bf16.mxu0 0
    %586 = vmatpush1.bf16.msra.mxu0 0
    %587 = vmatprep.subr.bf16.mxu0 0
    %588 = vmatpush1.bf16.msra.mxu0 0
    %589 = vmatprep.subr.bf16.mxu0 0
    %590 = vmatpush1.bf16.msra.mxu0 0
    %591 = vmatprep.subr.bf16.mxu0 0
    %592 = vmatpush1.bf16.msra.mxu0 0
    %593 = vmatprep.subr.bf16.mxu0 0
    %594 = vmatpush1.bf16.msra.mxu0 0
    %595 = vmatprep.mubr.bf16.mxu0 0
    %596 = vmatmul.mubr.bf16.gmra.mrb[0].mxu0 0
    %v597 = vpop.f32.mrb[0].mxu0
    %v598 = vadd.f32 0.0, %v597
    %v599 = vpop.f32.mrb[0].mxu0
    %v600 = vadd.f32 0.0, %v599
    %v601 = vpop.f32.mrb[0].mxu0
    %v602 = vpop.f32.mrb[0].mxu0
    %603 = vdwg.mxu0
    %604 = vmatprep.subr.bf16.mxu0 %v502
    %605 = vmatpush1.bf16.msra.mxu0 %v501
    %606 = vmatprep.subr.bf16.mxu0 %v506
    %607 = vmatpush1.bf16.msra.mxu0 %v505
    %608 = vmatprep.subr.bf16.mxu0 %v510
    %609 = vmatpush1.bf16.msra.mxu0 %v509
    %610 = vmatprep.subr.bf16.mxu0 %v514
    %611 = vmatpush1.bf16.msra.mxu0 %v513
    %612 = vmatprep.subr.bf16.mxu0 %v518
    %613 = vmatpush1.bf16.msra.mxu0 %v517
    %614 = vmatprep.subr.bf16.mxu0 %v522
    %615 = vmatpush1.bf16.msra.mxu0 %v521
    %616 = vmatprep.subr.bf16.mxu0 %v526
    %617 = vmatpush1.bf16.msra.mxu0 %v525
    %618 = vmatprep.subr.bf16.mxu0 %v530
    %619 = vmatpush1.bf16.msra.mxu0 %v529
    %620 = vmatprep.subr.bf16.mxu0 0
    %621 = vmatpush1.bf16.msra.mxu0 0
    %622 = vmatprep.subr.bf16.mxu0 0
    %623 = vmatpush1.bf16.msra.mxu0 0
    %624 = vmatprep.subr.bf16.mxu0 0
    %625 = vmatpush1.bf16.msra.mxu0 0
    %626 = vmatprep.subr.bf16.mxu0 0
    %627 = vmatpush1.bf16.msra.mxu0 0
    %628 = vmatprep.subr.bf16.mxu0 0
    %629 = vmatpush1.bf16.msra.mxu0 0
    %630 = vmatprep.subr.bf16.mxu0 0
    %631 = vmatpush1.bf16.msra.mxu0 0
    %632 = vmatprep.subr.bf16.mxu0 0
    %633 = vmatpush1.bf16.msra.mxu0 0
    %634 = vmatprep.subr.bf16.mxu0 0
    %635 = vmatpush1.bf16.msra.mxu0 0
    %636 = vmatprep.mubr.bf16.mxu0 0
    %637 = vmatmul.mubr.bf16.gmra.mrb[0].mxu0 0
    %v638 = vpop.f32.mrb[0].mxu0
    %v639 = vadd.f32 0.0, %v638
    %v640 = vpop.f32.mrb[0].mxu0
    %v641 = vadd.f32 0.0, %v640
    %v642 = vpop.f32.mrb[0].mxu0
    %v643 = vpop.f32.mrb[0].mxu0
    %644 = vdwg.mxu0
    %v645 = vadd.f32 %v399, %v598
    %v646 = vadd.f32 %v400, %v600
    %v647 = vadd.f32 %v401, %v639
    %v648 = vadd.f32 %v402, %v641
    %v649 = vmul.f32 %v645, 0.5
    %v650 = vtanh.pop %v649
    %v651 = vmul.f32 %v650, 0.5
    %v652 = vadd.f32 %v651, 0.5
    %v653 = vmul.f32 %v646, 0.5
    %v654 = vtanh.pop %v653
    %v655 = vmul.f32 %v654, 0.5
    %v656 = vadd.f32 %v655, 0.5
    %v657 = vtanh.pop %v647
    %v658 = vmul.f32 %v648, 0.5
    %v659 = vtanh.pop %v658
    %v660 = vmul.f32 %v659, 0.5
    %v661 = vadd.f32 %v660, 0.5
    %v662 = vmul.f32 %v656, 0.0
    %v663 = vmul.f32 %v652, %v657
    %v664 = vadd.f32 %v662, %v663
    %v665 = vtanh.pop %v664
    %v666 = vmul.f32 %v661, %v665
    %667 = vst [vmem:[#allocation3] sm:$0xff] %v666
    %s668 = scalar_lea.vmem [#allocation2], 32
    %v669 = vld [vmem:[%s668] sm:$0xff]
    %v670 = vld [vmem:[%s668 + $0x8] sm:$0xff]
    %v671 = vld [vmem:[%s668 + $0x10] sm:$0xff]
    %v672 = vld [vmem:[%s668 + $0x18] sm:$0xff]
    %v673 = vpack.c.bf16 %v666, %v666
    %674 = vmatprep.subr.bf16.mxu0 %v500
    %675 = vmatpush1.bf16.msra.mxu0 %v499
    %676 = vmatprep.subr.bf16.mxu0 %v504
    %677 = vmatpush1.bf16.msra.mxu0 %v503
    %678 = vmatprep.subr.bf16.mxu0 %v508
    %679 = vmatpush1.bf16.msra.mxu0 %v507
    %680 = vmatprep.subr.bf16.mxu0 %v512
    %681 = vmatpush1.bf16.msra.mxu0 %v511
    %682 = vmatprep.subr.bf16.mxu0 %v516
    %683 = vmatpush1.bf16.msra.mxu0 %v515
    %684 = vmatprep.subr.bf16.mxu0 %v520
    %685 = vmatpush1.bf16.msra.mxu0 %v519
    %686 = vmatprep.subr.bf16.mxu0 %v524
    %687 = vmatpush1.bf16.msra.mxu0 %v523
    %688 = vmatprep.subr.bf16.mxu0 %v528
    %689 = vmatpush1.bf16.msra.mxu0 %v527
    %690 = vmatprep.subr.bf16.mxu0 0
    %691 = vmatpush1.bf16.msra.mxu0 0
    %692 = vmatprep.subr.bf16.mxu0 0
    %693 = vmatpush1.bf16.msra.mxu0 0
    %694 = vmatprep.subr.bf16.mxu0 0
    %695 = vmatpush1.bf16.msra.mxu0 0
    %696 = vmatprep.subr.bf16.mxu0 0
    %697 = vmatpush1.bf16.msra.mxu0 0
    %698 = vmatprep.subr.bf16.mxu0 0
    %699 = vmatpush1.bf16.msra.mxu0 0
    %700 = vmatprep.subr.bf16.mxu0 0
    %701 = vmatpush1.bf16.msra.mxu0 0
    %702 = vmatprep.subr.bf16.mxu0 0
    %703 = vmatpush1.bf16.msra.mxu0 0
    %704 = vmatprep.subr.bf16.mxu0 0
    %705 = vmatpush1.bf16.msra.mxu0 0
    %706 = vmatprep.mubr.bf16.mxu0 0
    %707 = vmatmul.mubr.bf16.gmra.mrb[0].mxu0 %v673
    %v708 = vpop.f32.mrb[0].mxu0
    %v709 = vadd.f32 0.0, %v708
    %v710 = vpop.f32.mrb[0].mxu0
    %v711 = vadd.f32 0.0, %v710
    %v712 = vpop.f32.mrb[0].mxu0
    %v713 = vpop.f32.mrb[0].mxu0
    %714 = vdwg.mxu0
    %715 = vmatprep.subr.bf16.mxu0 %v502
    %716 = vmatpush1.bf16.msra.mxu0 %v501
    %717 = vmatprep.subr.bf16.mxu0 %v506
    %718 = vmatpush1.bf16.msra.mxu0 %v505
    %719 = vmatprep.subr.bf16.mxu0 %v510
    %720 = vmatpush1.bf16.msra.mxu0 %v509
    %721 = vmatprep.subr.bf16.mxu0 %v514
    %722 = vmatpush1.bf16.msra.mxu0 %v513
    %723 = vmatprep.subr.bf16.mxu0 %v518
    %724 = vmatpush1.bf16.msra.mxu0 %v517
    %725 = vmatprep.subr.bf16.mxu0 %v522
    %726 = vmatpush1.bf16.msra.mxu0 %v521
    %727 = vmatprep.subr.bf16.mxu0 %v526
    %728 = vmatpush1.bf16.msra.mxu0 %v525
    %729 = vmatprep.subr.bf16.mxu0 %v530
    %730 = vmatpush1.bf16.msra.mxu0 %v529
    %731 = vmatprep.subr.bf16.mxu0 0
    %732 = vmatpush1.bf16.msra.mxu0 0
    %733 = vmatprep.subr.bf16.mxu0 0
    %734 = vmatpush1.bf16.msra.mxu0 0
    %735 = vmatprep.subr.bf16.mxu0 0
    %736 = vmatpush1.bf16.msra.mxu0 0
    %737 = vmatprep.subr.bf16.mxu0 0
    %738 = vmatpush1.bf16.msra.mxu0 0
    %739 = vmatprep.subr.bf16.mxu0 0
    %740 = vmatpush1.bf16.msra.mxu0 0
    %741 = vmatprep.subr.bf16.mxu0 0
    %742 = vmatpush1.bf16.msra.mxu0 0
    %743 = vmatprep.subr.bf16.mxu0 0
    %744 = vmatpush1.bf16.msra.mxu0 0
    %745 = vmatprep.subr.bf16.mxu0 0
    %746 = vmatpush1.bf16.msra.mxu0 0
    %747 = vmatprep.mubr.bf16.mxu0 0
    %748 = vmatmul.mubr.bf16.gmra.mrb[0].mxu0 %v673
    %v749 = vpop.f32.mrb[0].mxu0
    %v750 = vadd.f32 0.0, %v749
    %v751 = vpop.f32.mrb[0].mxu0
    %v752 = vadd.f32 0.0, %v751
    %v753 = vpop.f32.mrb[0].mxu0
    %v754 = vpop.f32.mrb[0].mxu0
    %755 = vdwg.mxu0
    %v756 = vadd.f32 %v669, %v709
    %v757 = vadd.f32 %v670, %v711
    %v758 = vadd.f32 %v671, %v750
    %v759 = vadd.f32 %v672, %v752
    %v760 = vmul.f32 %v756, 0.5
    %v761 = vtanh.pop %v760
    %v762 = vmul.f32 %v761, 0.5
    %v763 = vadd.f32 %v762, 0.5
    %v764 = vmul.f32 %v757, 0.5
    %v765 = vtanh.pop %v764
    %v766 = vmul.f32 %v765, 0.5
    %v767 = vadd.f32 %v766, 0.5
    %v768 = vtanh.pop %v758
    %v769 = vmul.f32 %v759, 0.5
    %v770 = vtanh.pop %v769
    %v771 = vmul.f32 %v770, 0.5
    %v772 = vadd.f32 %v771, 0.5
    %v773 = vmul.f32 %v767, %v664
    %v774 = vmul.f32 %v763, %v768
    %v775 = vadd.f32 %v773, %v774
    %v776 = vtanh.pop %v775
    %v777 = vmul.f32 %v772, %v776
    %s778 = scalar_lea.vmem [#allocation3], 8
    %779 = vst [vmem:[%s778] sm:$0xff] %v777
    %s780 = scalar_lea.vmem [#allocation2], 64
    %v781 = vld [vmem:[%s780] sm:$0xff]
    %v782 = vld [vmem:[%s780 + $0x8] sm:$0xff]
    %v783 = vld [vmem:[%s780 + $0x10] sm:$0xff]
    %v784 = vld [vmem:[%s780 + $0x18] sm:$0xff]
    %v785 = vpack.c.bf16 %v777, %v777
    %786 = vmatprep.subr.bf16.mxu0 %v500
    %787 = vmatpush1.bf16.msra.mxu0 %v499
    %788 = vmatprep.subr.bf16.mxu0 %v504
    %789 = vmatpush1.bf16.msra.mxu0 %v503
    %790 = vmatprep.subr.bf16.mxu0 %v508
    %791 = vmatpush1.bf16.msra.mxu0 %v507
    %792 = vmatprep.subr.bf16.mxu0 %v512
    %793 = vmatpush1.bf16.msra.mxu0 %v511
    %794 = vmatprep.subr.bf16.mxu0 %v516
    %795 = vmatpush1.bf16.msra.mxu0 %v515
    %796 = vmatprep.subr.bf16.mxu0 %v520
    %797 = vmatpush1.bf16.msra.mxu0 %v519
    %798 = vmatprep.subr.bf16.mxu0 %v524
    %799 = vmatpush1.bf16.msra.mxu0 %v523
    %800 = vmatprep.subr.bf16.mxu0 %v528
    %801 = vmatpush1.bf16.msra.mxu0 %v527
    %802 = vmatprep.subr.bf16.mxu0 0
    %803 = vmatpush1.bf16.msra.mxu0 0
    %804 = vmatprep.subr.bf16.mxu0 0
    %805 = vmatpush1.bf16.msra.mxu0 0
    %806 = vmatprep.subr.bf16.mxu0 0
    %807 = vmatpush1.bf16.msra.mxu0 0
    %808 = vmatprep.subr.bf16.mxu0 0
    %809 = vmatpush1.bf16.msra.mxu0 0
    %810 = vmatprep.subr.bf16.mxu0 0
    %811 = vmatpush1.bf16.msra.mxu0 0
    %812 = vmatprep.subr.bf16.mxu0 0
    %813 = vmatpush1.bf16.msra.mxu0 0
    %814 = vmatprep.subr.bf16.mxu0 0
    %815 = vmatpush1.bf16.msra.mxu0 0
    %816 = vmatprep.subr.bf16.mxu0 0
    %817 = vmatpush1.bf16.msra.mxu0 0
    %818 = vmatprep.mubr.bf16.mxu0 0
    %819 = vmatmul.mubr.bf16.gmra.mrb[0].mxu0 %v785
    %v820 = vpop.f32.mrb[0].mxu0
    %v821 = vadd.f32 0.0, %v820
    %v822 = vpop.f32.mrb[0].mxu0
    %v823 = vadd.f32 0.0, %v822
    %v824 = vpop.f32.mrb[0].mxu0
    %v825 = vpop.f32.mrb[0].mxu0
    %826 = vdwg.mxu0
    %827 = vmatprep.subr.bf16.mxu0 %v502
    %828 = vmatpush1.bf16.msra.mxu0 %v501
    %829 = vmatprep.subr.bf16.mxu0 %v506
    %830 = vmatpush1.bf16.msra.mxu0 %v505
    %831 = vmatprep.subr.bf16.mxu0 %v510
    %832 = vmatpush1.bf16.msra.mxu0 %v509
    %833 = vmatprep.subr.bf16.mxu0 %v514
    %834 = vmatpush1.bf16.msra.mxu0 %v513
    %835 = vmatprep.subr.bf16.mxu0 %v518
    %836 = vmatpush1.bf16.msra.mxu0 %v517
    %837 = vmatprep.subr.bf16.mxu0 %v522
    %838 = vmatpush1.bf16.msra.mxu0 %v521
    %839 = vmatprep.subr.bf16.mxu0 %v526
    %840 = vmatpush1.bf16.msra.mxu0 %v525
    %841 = vmatprep.subr.bf16.mxu0 %v530
    %842 = vmatpush1.bf16.msra.mxu0 %v529
    %843 = vmatprep.subr.bf16.mxu0 0
    %844 = vmatpush1.bf16.msra.mxu0 0
    %845 = vmatprep.subr.bf16.mxu0 0
    %846 = vmatpush1.bf16.msra.mxu0 0
    %847 = vmatprep.subr.bf16.mxu0 0
    %848 = vmatpush1.bf16.msra.mxu0 0
    %849 = vmatprep.subr.bf16.mxu0 0
    %850 = vmatpush1.bf16.msra.mxu0 0
    %851 = vmatprep.subr.bf16.mxu0 0
    %852 = vmatpush1.bf16.msra.mxu0 0
    %853 = vmatprep.subr.bf16.mxu0 0
    %854 = vmatpush1.bf16.msra.mxu0 0
    %855 = vmatprep.subr.bf16.mxu0 0
    %856 = vmatpush1.bf16.msra.mxu0 0
    %857 = vmatprep.subr.bf16.mxu0 0
    %858 = vmatpush1.bf16.msra.mxu0 0
    %859 = vmatprep.mubr.bf16.mxu0 0
    %860 = vmatmul.mubr.bf16.gmra.mrb[0].mxu0 %v785
    %v861 = vpop.f32.mrb[0].mxu0
    %v862 = vadd.f32 0.0, %v861
    %v863 = vpop.f32.mrb[0].mxu0
    %v864 = vadd.f32 0.0, %v863
    %v865 = vpop.f32.mrb[0].mxu0
    %v866 = vpop.f32.mrb[0].mxu0
    %867 = vdwg.mxu0
    %v868 = vadd.f32 %v781, %v821
    %v869 = vadd.f32 %v782, %v823
    %v870 = vadd.f32 %v783, %v862
    %v871 = vadd.f32 %v784, %v864
    %v872 = vmul.f32 %v868, 0.5
    %v873 = vtanh.pop %v872
    %v874 = vmul.f32 %v873, 0.5
    %v875 = vadd.f32 %v874, 0.5
    %v876 = vmul.f32 %v869, 0.5
    %v877 = vtanh.pop %v876
    %v878 = vmul.f32 %v877, 0.5
    %v879 = vadd.f32 %v878, 0.5
    %v880 = vtanh.pop %v870
    %v881 = vmul.f32 %v871, 0.5
    %v882 = vtanh.pop %v881
    %v883 = vmul.f32 %v882, 0.5
    %v884 = vadd.f32 %v883, 0.5
    %v885 = vmul.f32 %v879, %v775
    %v886 = vmul.f32 %v875, %v880
    %v887 = vadd.f32 %v885, %v886
    %v888 = vtanh.pop %v887
    %v889 = vmul.f32 %v884, %v888
    %s890 = scalar_lea.vmem [#allocation3], 16
    %891 = vst [vmem:[%s890] sm:$0xff] %v889
    %s892 = scalar_lea.vmem [#allocation2], 96
    %v893 = vld [vmem:[%s892] sm:$0xff]
    %v894 = vld [vmem:[%s892 + $0x8] sm:$0xff]
    %v895 = vld [vmem:[%s892 + $0x10] sm:$0xff]
    %v896 = vld [vmem:[%s892 + $0x18] sm:$0xff]
    %v897 = vpack.c.bf16 %v889, %v889
    %898 = vmatprep.subr.bf16.mxu0 %v500
    %899 = vmatpush1.bf16.msra.mxu0 %v499
    %900 = vmatprep.subr.bf16.mxu0 %v504
    %901 = vmatpush1.bf16.msra.mxu0 %v503
    %902 = vmatprep.subr.bf16.mxu0 %v508
    %903 = vmatpush1.bf16.msra.mxu0 %v507
    %904 = vmatprep.subr.bf16.mxu0 %v512
    %905 = vmatpush1.bf16.msra.mxu0 %v511
    %906 = vmatprep.subr.bf16.mxu0 %v516
    %907 = vmatpush1.bf16.msra.mxu0 %v515
    %908 = vmatprep.subr.bf16.mxu0 %v520
    %909 = vmatpush1.bf16.msra.mxu0 %v519
    %910 = vmatprep.subr.bf16.mxu0 %v524
    %911 = vmatpush1.bf16.msra.mxu0 %v523
    %912 = vmatprep.subr.bf16.mxu0 %v528
    %913 = vmatpush1.bf16.msra.mxu0 %v527
    %914 = vmatprep.subr.bf16.mxu0 0
    %915 = vmatpush1.bf16.msra.mxu0 0
    %916 = vmatprep.subr.bf16.mxu0 0
    %917 = vmatpush1.bf16.msra.mxu0 0
    %918 = vmatprep.subr.bf16.mxu0 0
    %919 = vmatpush1.bf16.msra.mxu0 0
    %920 = vmatprep.subr.bf16.mxu0 0
    %921 = vmatpush1.bf16.msra.mxu0 0
    %922 = vmatprep.subr.bf16.mxu0 0
    %923 = vmatpush1.bf16.msra.mxu0 0
    %924 = vmatprep.subr.bf16.mxu0 0
    %925 = vmatpush1.bf16.msra.mxu0 0
    %926 = vmatprep.subr.bf16.mxu0 0
    %927 = vmatpush1.bf16.msra.mxu0 0
    %928 = vmatprep.subr.bf16.mxu0 0
    %929 = vmatpush1.bf16.msra.mxu0 0
    %930 = vmatprep.mubr.bf16.mxu0 0
    %931 = vmatmul.mubr.bf16.gmra.mrb[0].mxu0 %v897
    %v932 = vpop.f32.mrb[0].mxu0
    %v933 = vadd.f32 0.0, %v932
    %v934 = vpop.f32.mrb[0].mxu0
    %v935 = vadd.f32 0.0, %v934
    %v936 = vpop.f32.mrb[0].mxu0
    %v937 = vpop.f32.mrb[0].mxu0
    %938 = vdwg.mxu0
    %939 = vmatprep.subr.bf16.mxu0 %v502
    %940 = vmatpush1.bf16.msra.mxu0 %v501
    %941 = vmatprep.subr.bf16.mxu0 %v506
    %942 = vmatpush1.bf16.msra.mxu0 %v505
    %943 = vmatprep.subr.bf16.mxu0 %v510
    %944 = vmatpush1.bf16.msra.mxu0 %v509
    %945 = vmatprep.subr.bf16.mxu0 %v514
    %946 = vmatpush1.bf16.msra.mxu0 %v513
    %947 = vmatprep.subr.bf16.mxu0 %v518
    %948 = vmatpush1.bf16.msra.mxu0 %v517
    %949 = vmatprep.subr.bf16.mxu0 %v522
    %950 = vmatpush1.bf16.msra.mxu0 %v521
    %951 = vmatprep.subr.bf16.mxu0 %v526
    %952 = vmatpush1.bf16.msra.mxu0 %v525
    %953 = vmatprep.subr.bf16.mxu0 %v530
    %954 = vmatpush1.bf16.msra.mxu0 %v529
    %955 = vmatprep.subr.bf16.mxu0 0
    %956 = vmatpush1.bf16.msra.mxu0 0
    %957 = vmatprep.subr.bf16.mxu0 0
    %958 = vmatpush1.bf16.msra.mxu0 0
    %959 = vmatprep.subr.bf16.mxu0 0
    %960 = vmatpush1.bf16.msra.mxu0 0
    %961 = vmatprep.subr.bf16.mxu0 0
    %962 = vmatpush1.bf16.msra.mxu0 0
    %963 = vmatprep.subr.bf16.mxu0 0
    %964 = vmatpush1.bf16.msra.mxu0 0
    %965 = vmatprep.subr.bf16.mxu0 0
    %966 = vmatpush1.bf16.msra.mxu0 0
    %967 = vmatprep.subr.bf16.mxu0 0
    %968 = vmatpush1.bf16.msra.mxu0 0
    %969 = vmatprep.subr.bf16.mxu0 0
    %970 = vmatpush1.bf16.msra.mxu0 0
    %971 = vmatprep.mubr.bf16.mxu0 0
    %972 = vmatmul.mubr.bf16.gmra.mrb[0].mxu0 %v897
    %v973 = vpop.f32.mrb[0].mxu0
    %v974 = vadd.f32 0.0, %v973
    %v975 = vpop.f32.mrb[0].mxu0
    %v976 = vadd.f32 0.0, %v975
    %v977 = vpop.f32.mrb[0].mxu0
    %v978 = vpop.f32.mrb[0].mxu0
    %979 = vdwg.mxu0
    %v980 = vadd.f32 %v893, %v933
    %v981 = vadd.f32 %v894, %v935
    %v982 = vadd.f32 %v895, %v974
    %v983 = vadd.f32 %v896, %v976
    %v984 = vmul.f32 %v980, 0.5
    %v985 = vtanh.pop %v984
    %v986 = vmul.f32 %v985, 0.5
    %v987 = vadd.f32 %v986, 0.5
    %v988 = vmul.f32 %v981, 0.5
    %v989 = vtanh.pop %v988
    %v990 = vmul.f32 %v989, 0.5
    %v991 = vadd.f32 %v990, 0.5
    %v992 = vtanh.pop %v982
    %v993 = vmul.f32 %v983, 0.5
    %v994 = vtanh.pop %v993
    %v995 = vmul.f32 %v994, 0.5
    %v996 = vadd.f32 %v995, 0.5
    %v997 = vmul.f32 %v991, %v887
    %v998 = vmul.f32 %v987, %v992
    %v999 = vadd.f32 %v997, %v998
    %v1000 = vtanh.pop %v999
    %v1001 = vmul.f32 %v996, %v1000
    %s1002 = scalar_lea.vmem [#allocation3], 24
    %1003 = vst [vmem:[%s1002] sm:$0xff] %v1001
    %s1004 = scalar_lea.vmem [#allocation2], 128
    %v1005 = vld [vmem:[%s1004] sm:$0xff]
    %v1006 = vld [vmem:[%s1004 + $0x8] sm:$0xff]
    %v1007 = vld [vmem:[%s1004 + $0x10] sm:$0xff]
    %v1008 = vld [vmem:[%s1004 + $0x18] sm:$0xff]
    %v1009 = vpack.c.bf16 %v1001, %v1001
    %1010 = vmatprep.subr.bf16.mxu0 %v500
    %1011 = vmatpush1.bf16.msra.mxu0 %v499
    %1012 = vmatprep.subr.bf16.mxu0 %v504
    %1013 = vmatpush1.bf16.msra.mxu0 %v503
    %1014 = vmatprep.subr.bf16.mxu0 %v508
    %1015 = vmatpush1.bf16.msra.mxu0 %v507
    %1016 = vmatprep.subr.bf16.mxu0 %v512
    %1017 = vmatpush1.bf16.msra.mxu0 %v511
    %1018 = vmatprep.subr.bf16.mxu0 %v516
    %1019 = vmatpush1.bf16.msra.mxu0 %v515
    %1020 = vmatprep.subr.bf16.mxu0 %v520
    %1021 = vmatpush1.bf16.msra.mxu0 %v519
    %1022 = vmatprep.subr.bf16.mxu0 %v524
    %1023 = vmatpush1.bf16.msra.mxu0 %v523
    %1024 = vmatprep.subr.bf16.mxu0 %v528
    %1025 = vmatpush1.bf16.msra.mxu0 %v527
    %1026 = vmatprep.subr.bf16.mxu0 0
    %1027 = vmatpush1.bf16.msra.mxu0 0
    %1028 = vmatprep.subr.bf16.mxu0 0
    %1029 = vmatpush1.bf16.msra.mxu0 0
    %1030 = vmatprep.subr.bf16.mxu0 0
    %1031 = vmatpush1.bf16.msra.mxu0 0
    %1032 = vmatprep.subr.bf16.mxu0 0
    %1033 = vmatpush1.bf16.msra.mxu0 0
    %1034 = vmatprep.subr.bf16.mxu0 0
    %1035 = vmatpush1.bf16.msra.mxu0 0
    %1036 = vmatprep.subr.bf16.mxu0 0
    %1037 = vmatpush1.bf16.msra.mxu0 0
    %1038 = vmatprep.subr.bf16.mxu0 0
    %1039 = vmatpush1.bf16.msra.mxu0 0
    %1040 = vmatprep.subr.bf16.mxu0 0
    %1041 = vmatpush1.bf16.msra.mxu0 0
    %1042 = vmatprep.mubr.bf16.mxu0 0
    %1043 = vmatmul.mubr.bf16.gmra.mrb[0].mxu0 %v1009
    %v1044 = vpop.f32.mrb[0].mxu0
    %v1045 = vadd.f32 0.0, %v1044
    %v1046 = vpop.f32.mrb[0].mxu0
    %v1047 = vadd.f32 0.0, %v1046
    %v1048 = vpop.f32.mrb[0].mxu0
    %v1049 = vpop.f32.mrb[0].mxu0
    %1050 = vdwg.mxu0
    %1051 = vmatprep.subr.bf16.mxu0 %v502
    %1052 = vmatpush1.bf16.msra.mxu0 %v501
    %1053 = vmatprep.subr.bf16.mxu0 %v506
    %1054 = vmatpush1.bf16.msra.mxu0 %v505
    %1055 = vmatprep.subr.bf16.mxu0 %v510
    %1056 = vmatpush1.bf16.msra.mxu0 %v509
    %1057 = vmatprep.subr.bf16.mxu0 %v514
    %1058 = vmatpush1.bf16.msra.mxu0 %v513
    %1059 = vmatprep.subr.bf16.mxu0 %v518
    %1060 = vmatpush1.bf16.msra.mxu0 %v517
    %1061 = vmatprep.subr.bf16.mxu0 %v522
    %1062 = vmatpush1.bf16.msra.mxu0 %v521
    %1063 = vmatprep.subr.bf16.mxu0 %v526
    %1064 = vmatpush1.bf16.msra.mxu0 %v525
    %1065 = vmatprep.subr.bf16.mxu0 %v530
    %1066 = vmatpush1.bf16.msra.mxu0 %v529
    %1067 = vmatprep.subr.bf16.mxu0 0
    %1068 = vmatpush1.bf16.msra.mxu0 0
    %1069 = vmatprep.subr.bf16.mxu0 0
    %1070 = vmatpush1.bf16.msra.mxu0 0
    %1071 = vmatprep.subr.bf16.mxu0 0
    %1072 = vmatpush1.bf16.msra.mxu0 0
    %1073 = vmatprep.subr.bf16.mxu0 0
    %1074 = vmatpush1.bf16.msra.mxu0 0
    %1075 = vmatprep.subr.bf16.mxu0 0
    %1076 = vmatpush1.bf16.msra.mxu0 0
    %1077 = vmatprep.subr.bf16.mxu0 0
    %1078 = vmatpush1.bf16.msra.mxu0 0
    %1079 = vmatprep.subr.bf16.mxu0 0
    %1080 = vmatpush1.bf16.msra.mxu0 0
    %1081 = vmatprep.subr.bf16.mxu0 0
    %1082 = vmatpush1.bf16.msra.mxu0 0
    %1083 = vmatprep.mubr.bf16.mxu0 0
    %1084 = vmatmul.mubr.bf16.gmra.mrb[0].mxu0 %v1009
    %v1085 = vpop.f32.mrb[0].mxu0
    %v1086 = vadd.f32 0.0, %v1085
    %v1087 = vpop.f32.mrb[0].mxu0
    %v1088 = vadd.f32 0.0, %v1087
    %v1089 = vpop.f32.mrb[0].mxu0
    %v1090 = vpop.f32.mrb[0].mxu0
    %1091 = vdwg.mxu0
    %v1092 = vadd.f32 %v1005, %v1045
    %v1093 = vadd.f32 %v1006, %v1047
    %v1094 = vadd.f32 %v1007, %v1086
    %v1095 = vadd.f32 %v1008, %v1088
    %v1096 = vmul.f32 %v1092, 0.5
    %v1097 = vtanh.pop %v1096
    %v1098 = vmul.f32 %v1097, 0.5
    %v1099 = vadd.f32 %v1098, 0.5
    %v1100 = vmul.f32 %v1093, 0.5
    %v1101 = vtanh.pop %v1100
    %v1102 = vmul.f32 %v1101, 0.5
    %v1103 = vadd.f32 %v1102, 0.5
    %v1104 = vtanh.pop %v1094
    %v1105 = vmul.f32 %v1095, 0.5
    %v1106 = vtanh.pop %v1105
    %v1107 = vmul.f32 %v1106, 0.5
    %v1108 = vadd.f32 %v1107, 0.5
    %v1109 = vmul.f32 %v1103, %v999
    %v1110 = vmul.f32 %v1099, %v1104
    %v1111 = vadd.f32 %v1109, %v1110
    %v1112 = vtanh.pop %v1111
    %v1113 = vmul.f32 %v1108, %v1112
    %s1114 = scalar_lea.vmem [#allocation3], 32
    %1115 = vst [vmem:[%s1114] sm:$0xff] %v1113
    %s1116 = scalar_lea.vmem [#allocation2], 160
    %v1117 = vld [vmem:[%s1116] sm:$0xff]
    %v1118 = vld [vmem:[%s1116 + $0x8] sm:$0xff]
    %v1119 = vld [vmem:[%s1116 + $0x10] sm:$0xff]
    %v1120 = vld [vmem:[%s1116 + $0x18] sm:$0xff]
    %v1121 = vpack.c.bf16 %v1113, %v1113
    %1122 = vmatprep.subr.bf16.mxu0 %v500
    %1123 = vmatpush1.bf16.msra.mxu0 %v499
    %1124 = vmatprep.subr.bf16.mxu0 %v504
    %1125 = vmatpush1.bf16.msra.mxu0 %v503
    %1126 = vmatprep.subr.bf16.mxu0 %v508
    %1127 = vmatpush1.bf16.msra.mxu0 %v507
    %1128 = vmatprep.subr.bf16.mxu0 %v512
    %1129 = vmatpush1.bf16.msra.mxu0 %v511
    %1130 = vmatprep.subr.bf16.mxu0 %v516
    %1131 = vmatpush1.bf16.msra.mxu0 %v515
    %1132 = vmatprep.subr.bf16.mxu0 %v520
    %1133 = vmatpush1.bf16.msra.mxu0 %v519
    %1134 = vmatprep.subr.bf16.mxu0 %v524
    %1135 = vmatpush1.bf16.msra.mxu0 %v523
    %1136 = vmatprep.subr.bf16.mxu0 %v528
    %1137 = vmatpush1.bf16.msra.mxu0 %v527
    %1138 = vmatprep.subr.bf16.mxu0 0
    %1139 = vmatpush1.bf16.msra.mxu0 0
    %1140 = vmatprep.subr.bf16.mxu0 0
    %1141 = vmatpush1.bf16.msra.mxu0 0
    %1142 = vmatprep.subr.bf16.mxu0 0
    %1143 = vmatpush1.bf16.msra.mxu0 0
    %1144 = vmatprep.subr.bf16.mxu0 0
    %1145 = vmatpush1.bf16.msra.mxu0 0
    %1146 = vmatprep.subr.bf16.mxu0 0
    %1147 = vmatpush1.bf16.msra.mxu0 0
    %1148 = vmatprep.subr.bf16.mxu0 0
    %1149 = vmatpush1.bf16.msra.mxu0 0
    %1150 = vmatprep.subr.bf16.mxu0 0
    %1151 = vmatpush1.bf16.msra.mxu0 0
    %1152 = vmatprep.subr.bf16.mxu0 0
    %1153 = vmatpush1.bf16.msra.mxu0 0
    %1154 = vmatprep.mubr.bf16.mxu0 0
    %1155 = vmatmul.mubr.bf16.gmra.mrb[0].mxu0 %v1121
    %v1156 = vpop.f32.mrb[0].mxu0
    %v1157 = vadd.f32 0.0, %v1156
    %v1158 = vpop.f32.mrb[0].mxu0
    %v1159 = vadd.f32 0.0, %v1158
    %v1160 = vpop.f32.mrb[0].mxu0
    %v1161 = vpop.f32.mrb[0].mxu0
    %1162 = vdwg.mxu0
    %1163 = vmatprep.subr.bf16.mxu0 %v502
    %1164 = vmatpush1.bf16.msra.mxu0 %v501
    %1165 = vmatprep.subr.bf16.mxu0 %v506
    %1166 = vmatpush1.bf16.msra.mxu0 %v505
    %1167 = vmatprep.subr.bf16.mxu0 %v510
    %1168 = vmatpush1.bf16.msra.mxu0 %v509
    %1169 = vmatprep.subr.bf16.mxu0 %v514
    %1170 = vmatpush1.bf16.msra.mxu0 %v513
    %1171 = vmatprep.subr.bf16.mxu0 %v518
    %1172 = vmatpush1.bf16.msra.mxu0 %v517
    %1173 = vmatprep.subr.bf16.mxu0 %v522
    %1174 = vmatpush1.bf16.msra.mxu0 %v521
    %1175 = vmatprep.subr.bf16.mxu0 %v526
    %1176 = vmatpush1.bf16.msra.mxu0 %v525
    %1177 = vmatprep.subr.bf16.mxu0 %v530
    %1178 = vmatpush1.bf16.msra.mxu0 %v529
    %1179 = vmatprep.subr.bf16.mxu0 0
    %1180 = vmatpush1.bf16.msra.mxu0 0
    %1181 = vmatprep.subr.bf16.mxu0 0
    %1182 = vmatpush1.bf16.msra.mxu0 0
    %1183 = vmatprep.subr.bf16.mxu0 0
    %1184 = vmatpush1.bf16.msra.mxu0 0
    %1185 = vmatprep.subr.bf16.mxu0 0
    %1186 = vmatpush1.bf16.msra.mxu0 0
    %1187 = vmatprep.subr.bf16.mxu0 0
    %1188 = vmatpush1.bf16.msra.mxu0 0
    %1189 = vmatprep.subr.bf16.mxu0 0
    %1190 = vmatpush1.bf16.msra.mxu0 0
    %1191 = vmatprep.subr.bf16.mxu0 0
    %1192 = vmatpush1.bf16.msra.mxu0 0
    %1193 = vmatprep.subr.bf16.mxu0 0
    %1194 = vmatpush1.bf16.msra.mxu0 0
    %1195 = vmatprep.mubr.bf16.mxu0 0
    %1196 = vmatmul.mubr.bf16.gmra.mrb[0].mxu0 %v1121
    %v1197 = vpop.f32.mrb[0].mxu0
    %v1198 = vadd.f32 0.0, %v1197
    %v1199 = vpop.f32.mrb[0].mxu0
    %v1200 = vadd.f32 0.0, %v1199
    %v1201 = vpop.f32.mrb[0].mxu0
    %v1202 = vpop.f32.mrb[0].mxu0
    %1203 = vdwg.mxu0
    %v1204 = vadd.f32 %v1117, %v1157
    %v1205 = vadd.f32 %v1118, %v1159
    %v1206 = vadd.f32 %v1119, %v1198
    %v1207 = vadd.f32 %v1120, %v1200
    %v1208 = vmul.f32 %v1204, 0.5
    %v1209 = vtanh.pop %v1208
    %v1210 = vmul.f32 %v1209, 0.5
    %v1211 = vadd.f32 %v1210, 0.5
    %v1212 = vmul.f32 %v1205, 0.5
    %v1213 = vtanh.pop %v1212
    %v1214 = vmul.f32 %v1213, 0.5
    %v1215 = vadd.f32 %v1214, 0.5
    %v1216 = vtanh.pop %v1206
    %v1217 = vmul.f32 %v1207, 0.5
    %v1218 = vtanh.pop %v1217
    %v1219 = vmul.f32 %v1218, 0.5
    %v1220 = vadd.f32 %v1219, 0.5
    %v1221 = vmul.f32 %v1215, %v1111
    %v1222 = vmul.f32 %v1211, %v1216
    %v1223 = vadd.f32 %v1221, %v1222
    %v1224 = vtanh.pop %v1223
    %v1225 = vmul.f32 %v1220, %v1224
    %s1226 = scalar_lea.vmem [#allocation3], 40
    %1227 = vst [vmem:[%s1226] sm:$0xff] %v1225
    %s1228 = scalar_lea.vmem [#allocation2], 192
    %v1229 = vld [vmem:[%s1228] sm:$0xff]
    %v1230 = vld [vmem:[%s1228 + $0x8] sm:$0xff]
    %v1231 = vld [vmem:[%s1228 + $0x10] sm:$0xff]
    %v1232 = vld [vmem:[%s1228 + $0x18] sm:$0xff]
    %v1233 = vpack.c.bf16 %v1225, %v1225
    %1234 = vmatprep.subr.bf16.mxu0 %v500
    %1235 = vmatpush1.bf16.msra.mxu0 %v499
    %1236 = vmatprep.subr.bf16.mxu0 %v504
    %1237 = vmatpush1.bf16.msra.mxu0 %v503
    %1238 = vmatprep.subr.bf16.mxu0 %v508
    %1239 = vmatpush1.bf16.msra.mxu0 %v507
    %1240 = vmatprep.subr.bf16.mxu0 %v512
    %1241 = vmatpush1.bf16.msra.mxu0 %v511
    %1242 = vmatprep.subr.bf16.mxu0 %v516
    %1243 = vmatpush1.bf16.msra.mxu0 %v515
    %1244 = vmatprep.subr.bf16.mxu0 %v520
    %1245 = vmatpush1.bf16.msra.mxu0 %v519
    %1246 = vmatprep.subr.bf16.mxu0 %v524
    %1247 = vmatpush1.bf16.msra.mxu0 %v523
    %1248 = vmatprep.subr.bf16.mxu0 %v528
    %1249 = vmatpush1.bf16.msra.mxu0 %v527
    %1250 = vmatprep.subr.bf16.mxu0 0
    %1251 = vmatpush1.bf16.msra.mxu0 0
    %1252 = vmatprep.subr.bf16.mxu0 0
    %1253 = vmatpush1.bf16.msra.mxu0 0
    %1254 = vmatprep.subr.bf16.mxu0 0
    %1255 = vmatpush1.bf16.msra.mxu0 0
    %1256 = vmatprep.subr.bf16.mxu0 0
    %1257 = vmatpush1.bf16.msra.mxu0 0
    %1258 = vmatprep.subr.bf16.mxu0 0
    %1259 = vmatpush1.bf16.msra.mxu0 0
    %1260 = vmatprep.subr.bf16.mxu0 0
    %1261 = vmatpush1.bf16.msra.mxu0 0
    %1262 = vmatprep.subr.bf16.mxu0 0
    %1263 = vmatpush1.bf16.msra.mxu0 0
    %1264 = vmatprep.subr.bf16.mxu0 0
    %1265 = vmatpush1.bf16.msra.mxu0 0
    %1266 = vmatprep.mubr.bf16.mxu0 0
    %1267 = vmatmul.mubr.bf16.gmra.mrb[0].mxu0 %v1233
    %v1268 = vpop.f32.mrb[0].mxu0
    %v1269 = vadd.f32 0.0, %v1268
    %v1270 = vpop.f32.mrb[0].mxu0
    %v1271 = vadd.f32 0.0, %v1270
    %v1272 = vpop.f32.mrb[0].mxu0
    %v1273 = vpop.f32.mrb[0].mxu0
    %1274 = vdwg.mxu0
    %1275 = vmatprep.subr.bf16.mxu0 %v502
    %1276 = vmatpush1.bf16.msra.mxu0 %v501
    %1277 = vmatprep.subr.bf16.mxu0 %v506
    %1278 = vmatpush1.bf16.msra.mxu0 %v505
    %1279 = vmatprep.subr.bf16.mxu0 %v510
    %1280 = vmatpush1.bf16.msra.mxu0 %v509
    %1281 = vmatprep.subr.bf16.mxu0 %v514
    %1282 = vmatpush1.bf16.msra.mxu0 %v513
    %1283 = vmatprep.subr.bf16.mxu0 %v518
    %1284 = vmatpush1.bf16.msra.mxu0 %v517
    %1285 = vmatprep.subr.bf16.mxu0 %v522
    %1286 = vmatpush1.bf16.msra.mxu0 %v521
    %1287 = vmatprep.subr.bf16.mxu0 %v526
    %1288 = vmatpush1.bf16.msra.mxu0 %v525
    %1289 = vmatprep.subr.bf16.mxu0 %v530
    %1290 = vmatpush1.bf16.msra.mxu0 %v529
    %1291 = vmatprep.subr.bf16.mxu0 0
    %1292 = vmatpush1.bf16.msra.mxu0 0
    %1293 = vmatprep.subr.bf16.mxu0 0
    %1294 = vmatpush1.bf16.msra.mxu0 0
    %1295 = vmatprep.subr.bf16.mxu0 0
    %1296 = vmatpush1.bf16.msra.mxu0 0
    %1297 = vmatprep.subr.bf16.mxu0 0
    %1298 = vmatpush1.bf16.msra.mxu0 0
    %1299 = vmatprep.subr.bf16.mxu0 0
    %1300 = vmatpush1.bf16.msra.mxu0 0
    %1301 = vmatprep.subr.bf16.mxu0 0
    %1302 = vmatpush1.bf16.msra.mxu0 0
    %1303 = vmatprep.subr.bf16.mxu0 0
    %1304 = vmatpush1.bf16.msra.mxu0 0
    %1305 = vmatprep.subr.bf16.mxu0 0
    %1306 = vmatpush1.bf16.msra.mxu0 0
    %1307 = vmatprep.mubr.bf16.mxu0 0
    %1308 = vmatmul.mubr.bf16.gmra.mrb[0].mxu0 %v1233
    %v1309 = vpop.f32.mrb[0].mxu0
    %v1310 = vadd.f32 0.0, %v1309
    %v1311 = vpop.f32.mrb[0].mxu0
    %v1312 = vadd.f32 0.0, %v1311
    %v1313 = vpop.f32.mrb[0].mxu0
    %v1314 = vpop.f32.mrb[0].mxu0
    %1315 = vdwg.mxu0
    %v1316 = vadd.f32 %v1229, %v1269
    %v1317 = vadd.f32 %v1230, %v1271
    %v1318 = vadd.f32 %v1231, %v1310
    %v1319 = vadd.f32 %v1232, %v1312
    %v1320 = vmul.f32 %v1316, 0.5
    %v1321 = vtanh.pop %v1320
    %v1322 = vmul.f32 %v1321, 0.5
    %v1323 = vadd.f32 %v1322, 0.5
    %v1324 = vmul.f32 %v1317, 0.5
    %v1325 = vtanh.pop %v1324
    %v1326 = vmul.f32 %v1325, 0.5
    %v1327 = vadd.f32 %v1326, 0.5
    %v1328 = vtanh.pop %v1318
    %v1329 = vmul.f32 %v1319, 0.5
    %v1330 = vtanh.pop %v1329
    %v1331 = vmul.f32 %v1330, 0.5
    %v1332 = vadd.f32 %v1331, 0.5
    %v1333 = vmul.f32 %v1327, %v1223
    %v1334 = vmul.f32 %v1323, %v1328
    %v1335 = vadd.f32 %v1333, %v1334
    %v1336 = vtanh.pop %v1335
    %v1337 = vmul.f32 %v1332, %v1336
    %s1338 = scalar_lea.vmem [#allocation3], 48
    %1339 = vst [vmem:[%s1338] sm:$0xff] %v1337
    %s1340 = scalar_lea.vmem [#allocation2], 224
    %v1341 = vld [vmem:[%s1340] sm:$0xff]
    %v1342 = vld [vmem:[%s1340 + $0x8] sm:$0xff]
    %v1343 = vld [vmem:[%s1340 + $0x10] sm:$0xff]
    %v1344 = vld [vmem:[%s1340 + $0x18] sm:$0xff]
    %v1345 = vpack.c.bf16 %v1337, %v1337
    %1346 = vmatprep.subr.bf16.mxu0 %v500
    %1347 = vmatpush1.bf16.msra.mxu0 %v499
    %1348 = vmatprep.subr.bf16.mxu0 %v504
    %1349 = vmatpush1.bf16.msra.mxu0 %v503
    %1350 = vmatprep.subr.bf16.mxu0 %v508
    %1351 = vmatpush1.bf16.msra.mxu0 %v507
    %1352 = vmatprep.subr.bf16.mxu0 %v512
    %1353 = vmatpush1.bf16.msra.mxu0 %v511
    %1354 = vmatprep.subr.bf16.mxu0 %v516
    %1355 = vmatpush1.bf16.msra.mxu0 %v515
    %1356 = vmatprep.subr.bf16.mxu0 %v520
    %1357 = vmatpush1.bf16.msra.mxu0 %v519
    %1358 = vmatprep.subr.bf16.mxu0 %v524
    %1359 = vmatpush1.bf16.msra.mxu0 %v523
    %1360 = vmatprep.subr.bf16.mxu0 %v528
    %1361 = vmatpush1.bf16.msra.mxu0 %v527
    %1362 = vmatprep.subr.bf16.mxu0 0
    %1363 = vmatpush1.bf16.msra.mxu0 0
    %1364 = vmatprep.subr.bf16.mxu0 0
    %1365 = vmatpush1.bf16.msra.mxu0 0
    %1366 = vmatprep.subr.bf16.mxu0 0
    %1367 = vmatpush1.bf16.msra.mxu0 0
    %1368 = vmatprep.subr.bf16.mxu0 0
    %1369 = vmatpush1.bf16.msra.mxu0 0
    %1370 = vmatprep.subr.bf16.mxu0 0
    %1371 = vmatpush1.bf16.msra.mxu0 0
    %1372 = vmatprep.subr.bf16.mxu0 0
    %1373 = vmatpush1.bf16.msra.mxu0 0
    %1374 = vmatprep.subr.bf16.mxu0 0
    %1375 = vmatpush1.bf16.msra.mxu0 0
    %1376 = vmatprep.subr.bf16.mxu0 0
    %1377 = vmatpush1.bf16.msra.mxu0 0
    %1378 = vmatprep.mubr.bf16.mxu0 0
    %1379 = vmatmul.mubr.bf16.gmra.mrb[0].mxu0 %v1345
    %v1380 = vpop.f32.mrb[0].mxu0
    %v1381 = vadd.f32 0.0, %v1380
    %v1382 = vpop.f32.mrb[0].mxu0
    %v1383 = vadd.f32 0.0, %v1382
    %v1384 = vpop.f32.mrb[0].mxu0
    %v1385 = vpop.f32.mrb[0].mxu0
    %1386 = vdwg.mxu0
    %1387 = vmatprep.subr.bf16.mxu0 %v502
    %1388 = vmatpush1.bf16.msra.mxu0 %v501
    %1389 = vmatprep.subr.bf16.mxu0 %v506
    %1390 = vmatpush1.bf16.msra.mxu0 %v505
    %1391 = vmatprep.subr.bf16.mxu0 %v510
    %1392 = vmatpush1.bf16.msra.mxu0 %v509
    %1393 = vmatprep.subr.bf16.mxu0 %v514
    %1394 = vmatpush1.bf16.msra.mxu0 %v513
    %1395 = vmatprep.subr.bf16.mxu0 %v518
    %1396 = vmatpush1.bf16.msra.mxu0 %v517
    %1397 = vmatprep.subr.bf16.mxu0 %v522
    %1398 = vmatpush1.bf16.msra.mxu0 %v521
    %1399 = vmatprep.subr.bf16.mxu0 %v526
    %1400 = vmatpush1.bf16.msra.mxu0 %v525
    %1401 = vmatprep.subr.bf16.mxu0 %v530
    %1402 = vmatpush1.bf16.msra.mxu0 %v529
    %1403 = vmatprep.subr.bf16.mxu0 0
    %1404 = vmatpush1.bf16.msra.mxu0 0
    %1405 = vmatprep.subr.bf16.mxu0 0
    %1406 = vmatpush1.bf16.msra.mxu0 0
    %1407 = vmatprep.subr.bf16.mxu0 0
    %1408 = vmatpush1.bf16.msra.mxu0 0
    %1409 = vmatprep.subr.bf16.mxu0 0
    %1410 = vmatpush1.bf16.msra.mxu0 0
    %1411 = vmatprep.subr.bf16.mxu0 0
    %1412 = vmatpush1.bf16.msra.mxu0 0
    %1413 = vmatprep.subr.bf16.mxu0 0
    %1414 = vmatpush1.bf16.msra.mxu0 0
    %1415 = vmatprep.subr.bf16.mxu0 0
    %1416 = vmatpush1.bf16.msra.mxu0 0
    %1417 = vmatprep.subr.bf16.mxu0 0
    %1418 = vmatpush1.bf16.msra.mxu0 0
    %1419 = vmatprep.mubr.bf16.mxu0 0
    %1420 = vmatmul.mubr.bf16.gmra.mrb[0].mxu0 %v1345
    %v1421 = vpop.f32.mrb[0].mxu0
    %v1422 = vadd.f32 0.0, %v1421
    %v1423 = vpop.f32.mrb[0].mxu0
    %v1424 = vadd.f32 0.0, %v1423
    %v1425 = vpop.f32.mrb[0].mxu0
    %v1426 = vpop.f32.mrb[0].mxu0
    %1427 = vdwg.mxu0
    %v1428 = vadd.f32 %v1341, %v1381
    %v1429 = vadd.f32 %v1342, %v1383
    %v1430 = vadd.f32 %v1343, %v1422
    %v1431 = vadd.f32 %v1344, %v1424
    %v1432 = vmul.f32 %v1428, 0.5
    %v1433 = vtanh.pop %v1432
    %v1434 = vmul.f32 %v1433, 0.5
    %v1435 = vadd.f32 %v1434, 0.5
    %v1436 = vmul.f32 %v1429, 0.5
    %v1437 = vtanh.pop %v1436
    %v1438 = vmul.f32 %v1437, 0.5
    %v1439 = vadd.f32 %v1438, 0.5
    %v1440 = vtanh.pop %v1430
    %v1441 = vmul.f32 %v1431, 0.5
    %v1442 = vtanh.pop %v1441
    %v1443 = vmul.f32 %v1442, 0.5
    %v1444 = vadd.f32 %v1443, 0.5
    %v1445 = vmul.f32 %v1439, %v1335
    %v1446 = vmul.f32 %v1435, %v1440
    %v1447 = vadd.f32 %v1445, %v1446
    %v1448 = vtanh.pop %v1447
    %v1449 = vmul.f32 %v1444, %v1448
    %s1450 = scalar_lea.vmem [#allocation3], 56
    %1451 = vst [vmem:[%s1450] sm:$0xff] %v1449
    %v1452 = vld [vmem:[#allocation3] sm:$0xff]
    %v1453 = vld [vmem:[#allocation3 + $0x8] sm:$0xff]
    %v1454 = vld [vmem:[#allocation3 + $0x10] sm:$0xff]
    %v1455 = vld [vmem:[#allocation3 + $0x18] sm:$0xff]
    %v1456 = vld [vmem:[#allocation3 + $0x20] sm:$0xff]
    %v1457 = vld [vmem:[#allocation3 + $0x28] sm:$0xff]
    %v1458 = vld [vmem:[#allocation3 + $0x30] sm:$0xff]
    %v1459 = vld [vmem:[#allocation3 + $0x38] sm:$0xff]
    %v1460 = vpack.c.bf16 %v1453, %v1452
    %v1461 = vpack.c.bf16 %v1455, %v1454
    %v1462 = vpack.c.bf16 %v1457, %v1456
    %v1463 = vpack.c.bf16 %v1459, %v1458
    %v1464 = vld [vmem:[%s4] sm:$0xf]
    %v1465 = vld [vmem:[%s4 + $0x4] sm:$0xf]
    %v1466 = vld [vmem:[%s4 + $0x8] sm:$0xf]
    %v1467 = vld [vmem:[%s4 + $0xc] sm:$0xf]
    %v1468 = vld [vmem:[%s4 + $0x10] sm:$0xf]
    %v1469 = vld [vmem:[%s4 + $0x14] sm:$0xf]
    %v1470 = vld [vmem:[%s4 + $0x18] sm:$0xf]
    %v1471 = vld [vmem:[%s4 + $0x1c] sm:$0xf]
    %v1472 = vld [vmem:[%s4 + $0x20] sm:$0xf]
    %v1473 = vld [vmem:[%s4 + $0x24] sm:$0xf]
    %v1474 = vld [vmem:[%s4 + $0x28] sm:$0xf]
    %v1475 = vld [vmem:[%s4 + $0x2c] sm:$0xf]
    %v1476 = vld [vmem:[%s4 + $0x30] sm:$0xf]
    %v1477 = vld [vmem:[%s4 + $0x34] sm:$0xf]
    %v1478 = vld [vmem:[%s4 + $0x38] sm:$0xf]
    %v1479 = vld [vmem:[%s4 + $0x3c] sm:$0xf]
    %v1480 = vld [vmem:[%s5] sm:$0x1]
    %v1482 = vlaneseq
    %v1483 = vshrl.u32 %v1482, 7
    %v1484 = vsub.s32 0, %v1483
    %v1485 = vrot.slane %v1480, %v1484
    %v1503 = vunpack.c.l.b16 %v1464
    %v1504 = vunpack.c.l.b16 %v1465
    %v1505 = vunpack.c.l.b16 %v1466
    %v1506 = vunpack.c.l.b16 %v1467
    %v1507 = vunpack.c.l.b16 %v1468
    %v1508 = vunpack.c.l.b16 %v1469
    %v1509 = vunpack.c.l.b16 %v1470
    %v1510 = vunpack.c.l.b16 %v1471
    %v1511 = vunpack.c.l.b16 %v1472
    %v1512 = vunpack.c.l.b16 %v1473
    %v1513 = vunpack.c.l.b16 %v1474
    %v1514 = vunpack.c.l.b16 %v1475
    %v1515 = vunpack.c.l.b16 %v1476
    %v1516 = vunpack.c.l.b16 %v1477
    %v1517 = vunpack.c.l.b16 %v1478
    %v1518 = vunpack.c.l.b16 %v1479
    %v1519 = vpack.c.b16 %v1504, %v1503
    %v1520 = vpack.c.b16 %v1506, %v1505
    %v1521 = vpack.c.b16 %v1508, %v1507
    %v1522 = vpack.c.b16 %v1510, %v1509
    %v1523 = vpack.c.b16 %v1512, %v1511
    %v1524 = vpack.c.b16 %v1514, %v1513
    %v1525 = vpack.c.b16 %v1516, %v1515
    %v1526 = vpack.c.b16 %v1518, %v1517
    %1535 = vmatprep.subr.bf16.mxu0 0
    %1536 = vmatpush1.bf16.msra.mxu0 %v1519
    %1537 = vmatprep.subr.bf16.mxu0 0
    %1538 = vmatpush1.bf16.msra.mxu0 %v1520
    %1539 = vmatprep.subr.bf16.mxu0 0
    %1540 = vmatpush1.bf16.msra.mxu0 %v1521
    %1541 = vmatprep.subr.bf16.mxu0 0
    %1542 = vmatpush1.bf16.msra.mxu0 %v1522
    %1543 = vmatprep.subr.bf16.mxu0 0
    %1544 = vmatpush1.bf16.msra.mxu0 %v1523
    %1545 = vmatprep.subr.bf16.mxu0 0
    %1546 = vmatpush1.bf16.msra.mxu0 %v1524
    %1547 = vmatprep.subr.bf16.mxu0 0
    %1548 = vmatpush1.bf16.msra.mxu0 %v1525
    %1549 = vmatprep.subr.bf16.mxu0 0
    %1550 = vmatpush1.bf16.msra.mxu0 %v1526
    %1551 = vmatprep.subr.bf16.mxu0 0
    %1552 = vmatpush1.bf16.msra.mxu0 0
    %1553 = vmatprep.subr.bf16.mxu0 0
    %1554 = vmatpush1.bf16.msra.mxu0 0
    %1555 = vmatprep.subr.bf16.mxu0 0
    %1556 = vmatpush1.bf16.msra.mxu0 0
    %1557 = vmatprep.subr.bf16.mxu0 0
    %1558 = vmatpush1.bf16.msra.mxu0 0
    %1559 = vmatprep.subr.bf16.mxu0 0
    %1560 = vmatpush1.bf16.msra.mxu0 0
    %1561 = vmatprep.subr.bf16.mxu0 0
    %1562 = vmatpush1.bf16.msra.mxu0 0
    %1563 = vmatprep.subr.bf16.mxu0 0
    %1564 = vmatpush1.bf16.msra.mxu0 0
    %1565 = vmatprep.subr.bf16.mxu0 0
    %1566 = vmatpush1.bf16.msra.mxu0 0
    %1567 = vmatprep.mubr.bf16.mxu0 0
    %1568 = vmatmul.mubr.bf16.gmra.mrb[0].mxu0 %v1460
    %v1569 = vpop.f32.mrb[0].mxu0
    %v1570 = vadd.f32 %v1485, %v1569
    %v1571 = vpop.f32.mrb[0].mxu0
    %v1572 = vpop.f32.mrb[0].mxu0
    %v1573 = vadd.f32 %v1485, %v1572
    %v1574 = vpop.f32.mrb[0].mxu0
    %1575 = vmatprep.mubr.bf16.mxu0 0
    %1576 = vmatmul.mubr.bf16.gmra.mrb[0].mxu0 %v1461
    %v1577 = vpop.f32.mrb[0].mxu0
    %v1578 = vadd.f32 %v1485, %v1577
    %v1579 = vpop.f32.mrb[0].mxu0
    %v1580 = vpop.f32.mrb[0].mxu0
    %v1581 = vadd.f32 %v1485, %v1580
    %v1582 = vpop.f32.mrb[0].mxu0
    %1583 = vmatprep.mubr.bf16.mxu0 0
    %1584 = vmatmul.mubr.bf16.gmra.mrb[0].mxu0 %v1462
    %v1585 = vpop.f32.mrb[0].mxu0
    %v1586 = vadd.f32 %v1485, %v1585
    %v1587 = vpop.f32.mrb[0].mxu0
    %v1588 = vpop.f32.mrb[0].mxu0
    %v1589 = vadd.f32 %v1485, %v1588
    %v1590 = vpop.f32.mrb[0].mxu0
    %1591 = vmatprep.mubr.bf16.mxu0 0
    %1592 = vmatmul.mubr.bf16.gmra.mrb[0].mxu0 %v1463
    %v1593 = vpop.f32.mrb[0].mxu0
    %v1594 = vadd.f32 %v1485, %v1593
    %v1595 = vpop.f32.mrb[0].mxu0
    %v1596 = vpop.f32.mrb[0].mxu0
    %v1597 = vadd.f32 %v1485, %v1596
    %v1598 = vpop.f32.mrb[0].mxu0
    %1599 = vdwg.mxu0
    %vm1600 = vcmp.ge.f32.partialorder %v1570, 0.0
    %vm1601 = vcmp.ge.f32.partialorder %v1573, 0.0
    %vm1602 = vcmp.ge.f32.partialorder %v1578, 0.0
    %vm1603 = vcmp.ge.f32.partialorder %v1581, 0.0
    %vm1604 = vcmp.ge.f32.partialorder %v1586, 0.0
    %vm1605 = vcmp.ge.f32.partialorder %v1589, 0.0
    %vm1606 = vcmp.ge.f32.partialorder %v1594, 0.0
    %vm1607 = vcmp.ge.f32.partialorder %v1597, 0.0
    %v1608 = vmul.f32 %v1570, 0.1
    %v1609 = vmul.f32 %v1573, 0.1
    %v1610 = vmul.f32 %v1578, 0.1
    %v1611 = vmul.f32 %v1581, 0.1
    %v1612 = vmul.f32 %v1586, 0.1
    %v1613 = vmul.f32 %v1589, 0.1
    %v1614 = vmul.f32 %v1594, 0.1
    %v1615 = vmul.f32 %v1597, 0.1
    %v1616 = vsel %vm1600, %v1570, %v1608
    %v1617 = vsel %vm1601, %v1573, %v1609
    %v1618 = vsel %vm1602, %v1578, %v1610
    %v1619 = vsel %vm1603, %v1581, %v1611
    %v1620 = vsel %vm1604, %v1586, %v1612
    %v1621 = vsel %vm1605, %v1589, %v1613
    %v1622 = vsel %vm1606, %v1594, %v1614
    %v1623 = vsel %vm1607, %v1597, %v1615
    %v1624 = vld [vmem:[%s6] sm:$0x1]
    %v1626 = vlaneseq
    %v1627 = vshrl.u32 %v1626, 7
    %v1628 = vsub.s32 0, %v1627
    %v1629 = vrot.slane %v1624, %v1628
    %v1631 = vmul.f32 %v1616, %v1629
    %v1632 = vmul.f32 %v1617, %v1629
    %v1633 = vmul.f32 %v1618, %v1629
    %v1634 = vmul.f32 %v1619, %v1629
    %v1635 = vmul.f32 %v1620, %v1629
    %v1636 = vmul.f32 %v1621, %v1629
    %v1637 = vmul.f32 %v1622, %v1629
    %v1638 = vmul.f32 %v1623, %v1629
    %vm1639 = vcmask 523264
    %v1640 = vsel %vm1639, %v1631, 0.0
    %1641 = vadd.xlane.f32.xlu0 %v1640
    %v1642 = vpop.xlane.xlu0 %1641
    %v1643 = vsel %vm1639, %v1632, 0.0
    %1644 = vadd.xlane.f32.xlu0 %v1643
    %v1645 = vpop.xlane.xlu0 %1644
    %v1646 = vsel %vm1639, %v1633, 0.0
    %1647 = vadd.xlane.f32.xlu0 %v1646
    %v1648 = vpop.xlane.xlu0 %1647
    %v1649 = vsel %vm1639, %v1634, 0.0
    %1650 = vadd.xlane.f32.xlu0 %v1649
    %v1651 = vpop.xlane.xlu0 %1650
    %v1652 = vsel %vm1639, %v1635, 0.0
    %1653 = vadd.xlane.f32.xlu0 %v1652
    %v1654 = vpop.xlane.xlu0 %1653
    %v1655 = vsel %vm1639, %v1636, 0.0
    %1656 = vadd.xlane.f32.xlu0 %v1655
    %v1657 = vpop.xlane.xlu0 %1656
    %v1658 = vsel %vm1639, %v1637, 0.0
    %1659 = vadd.xlane.f32.xlu0 %v1658
    %v1660 = vpop.xlane.xlu0 %1659
    %v1661 = vsel %vm1639, %v1638, 0.0
    %1662 = vadd.xlane.f32.xlu0 %v1661
    %v1663 = vpop.xlane.xlu0 %1662
    %v1664 = vld [vmem:[#allocation4] sm:$0x1]
    %v1666 = vlaneseq
    %v1667 = vshrl.u32 %v1666, 7
    %v1668 = vsub.s32 0, %v1667
    %v1669 = vrot.slane %v1664, %v1668
    %v1671 = vadd.f32 %v1642, %v1669
    %v1672 = vadd.f32 %v1645, %v1669
    %v1673 = vadd.f32 %v1648, %v1669
    %v1674 = vadd.f32 %v1651, %v1669
    %v1675 = vadd.f32 %v1654, %v1669
    %v1676 = vadd.f32 %v1657, %v1669
    %v1677 = vadd.f32 %v1660, %v1669
    %v1678 = vadd.f32 %v1663, %v1669
    %vm1679 = vcmp.ge.f32.partialorder %v1671, 0.0
    %vm1680 = vcmp.ge.f32.partialorder %v1672, 0.0
    %vm1681 = vcmp.ge.f32.partialorder %v1673, 0.0
    %vm1682 = vcmp.ge.f32.partialorder %v1674, 0.0
    %vm1683 = vcmp.ge.f32.partialorder %v1675, 0.0
    %vm1684 = vcmp.ge.f32.partialorder %v1676, 0.0
    %vm1685 = vcmp.ge.f32.partialorder %v1677, 0.0
    %vm1686 = vcmp.ge.f32.partialorder %v1678, 0.0
    %v1687 = vmul.f32 %v1671, 0.1
    %v1688 = vmul.f32 %v1672, 0.1
    %v1689 = vmul.f32 %v1673, 0.1
    %v1690 = vmul.f32 %v1674, 0.1
    %v1691 = vmul.f32 %v1675, 0.1
    %v1692 = vmul.f32 %v1676, 0.1
    %v1693 = vmul.f32 %v1677, 0.1
    %v1694 = vmul.f32 %v1678, 0.1
    %v1695 = vsel %vm1679, %v1671, %v1687
    %v1696 = vsel %vm1680, %v1672, %v1688
    %v1697 = vsel %vm1681, %v1673, %v1689
    %v1698 = vsel %vm1682, %v1674, %v1690
    %v1699 = vsel %vm1683, %v1675, %v1691
    %v1700 = vsel %vm1684, %v1676, %v1692
    %v1701 = vsel %vm1685, %v1677, %v1693
    %v1702 = vsel %vm1686, %v1678, %v1694
    %vm1703 = vcmask 7168
    %1704 = vst.msk [vmem:[%s8] sm:$0xff] %vm1703, %v1695
    %1705 = vst.msk [vmem:[%s8 + $0x8] sm:$0xff] %vm1703, %v1696
    %1706 = vst.msk [vmem:[%s8 + $0x10] sm:$0xff] %vm1703, %v1697
    %1707 = vst.msk [vmem:[%s8 + $0x18] sm:$0xff] %vm1703, %v1698
    %1708 = vst.msk [vmem:[%s8 + $0x20] sm:$0xff] %vm1703, %v1699
    %1709 = vst.msk [vmem:[%s8 + $0x28] sm:$0xff] %vm1703, %v1700
    %1710 = vst.msk [vmem:[%s8 + $0x30] sm:$0xff] %vm1703, %v1701
    %1711 = vst.msk [vmem:[%s8 + $0x38] sm:$0xff] %vm1703, %v1702
    // Predicated region
    $region38: #{lstm_mlp_forward.1} parent=1 // pred_check
      _
    $region39: #{lstm_mlp_forward.1} parent=1 // pred_check_branch
      %1713 = sbr.rel (0) target = $region41
    $region40: #{lstm_mlp_forward.1} parent=1 // pred_region
      _
    $region41: #{lstm_mlp_forward.1} parent=1 // pred_fallthru
      _
    // Predicated region
    $region42: #{lstm_mlp_forward.1} parent=1 // pred_check
      _
    $region43: #{lstm_mlp_forward.1} parent=1 // pred_check_branch
      %1715 = sbr.rel (0) target = $region45
    $region44: #{lstm_mlp_forward.1} parent=1 // pred_region
      _
    $region45: #{lstm_mlp_forward.1} parent=1 // pred_fallthru
      _
    %1716 = vsyncpa [#allocation6], 1

</llo_original>
